<compile_context>
chip_gen: v7x
topology: tpu7x:2x2x1
jax: 0.10.0
libtpu: 0.0.40
codegen_flags: <defaults>
</compile_context>

<pallas_src>
import jax
import jax.numpy as jnp
from jax import lax
from jax.experimental import pallas as pl
from jax.experimental.pallas import tpu as pltpu
import numpy as np

_LANE = 128
_SUBLANE = 8


def _round_up(x, m):
    return ((x + m - 1) // m) * m


def rnn_fc_kernel(ids_ref, p_ref, whh_ref, wfc_ref, bfc_ref, out_ref):
    """RNN recurrence (projected-table gather) + final linear layer.

    ids_ref: (seq, batch_p)            int32 token ids, time-major, in SMEM
    p_ref:   (vocab, 1, hidden_p)      projected embedding table E@W_ih^T + (b_ih+b_hh)
                                       (leading axis untiled -> cheap dynamic row gather)
    whh_ref: (hidden_p, hidden_p)      W_hh^T (zero-padded)
    wfc_ref: (hidden_p, out_p)         W_fc^T (zero-padded)
    bfc_ref: (1, out_p)                b_fc (zero-padded)
    out_ref: (batch_p, out_p)
    """
    seq, batch_p = ids_ref.shape
    hidden_p = whh_ref.shape[0]

    whh = whh_ref[...]
    h = jnp.zeros((batch_p, hidden_p), dtype=jnp.float32)

    # Fully unrolled recurrence: only one dependent MXU dot + EUP tanh per step is on
    # the serial chain; the per-step row gathers do not depend on h, so the scheduler
    # can hoist them under the previous step's dot.
    for t in range(seq):
        xw_t = jnp.concatenate(
            [p_ref[ids_ref[t, b]] for b in range(batch_p)], axis=0)  # (batch_p, hidden_p)
        h = jnp.tanh(xw_t + jnp.dot(h, whh, preferred_element_type=jnp.float32))

    # Final linear layer on the last hidden state (lane-dense store).
    out_ref[...] = (jnp.dot(h, wfc_ref[...], preferred_element_type=jnp.float32)
                    + bfc_ref[...])


def rnn_model_forward(text, params):
    """JAX wrapper reproducing RNNModel.forward.

    text: int32 (batch, seq) token ids.
    Returns: float32 (batch, output_dim).
    """
    emb_table = params["embedding"]          # (vocab, emb)
    w_ih = params["w_ih"]                    # (hidden, emb)   (PyTorch layout)
    w_hh = params["w_hh"]                    # (hidden, hidden)
    b_ih = params["b_ih"]                    # (hidden,)
    b_hh = params["b_hh"]                    # (hidden,)
    w_fc = params["w_fc"]                    # (out, hidden)
    b_fc = params["b_fc"]                    # (out,)

    batch, seq = text.shape
    vocab = emb_table.shape[0]
    hidden = w_hh.shape[0]
    out_dim = w_fc.shape[0]

    batch_p = _round_up(batch, _SUBLANE)
    hidden_p = _round_up(hidden, _LANE)
    out_p = _round_up(out_dim, _LANE)

    # Projected embedding table: one tiny one-time XLA matmul (off the critical path,
    # cacheable across calls).  Padded hidden columns are exactly zero.
    proj = (emb_table.astype(jnp.float32) @ jnp.transpose(w_ih).astype(jnp.float32)
            + (b_ih + b_hh).astype(jnp.float32))                      # (vocab, hidden)
    proj = jnp.pad(proj, ((0, 0), (0, hidden_p - hidden)))
    proj = proj.reshape(vocab, 1, hidden_p)                           # untiled leading axis

    whh_t = jnp.pad(jnp.transpose(w_hh).astype(jnp.float32),
                    ((0, hidden_p - hidden), (0, hidden_p - hidden)))  # (hidden_p, hidden_p)
    wfc_t = jnp.pad(jnp.transpose(w_fc).astype(jnp.float32),
                    ((0, hidden_p - hidden), (0, out_p - out_dim)))    # (hidden_p, out_p)
    bfc = jnp.pad(b_fc.astype(jnp.float32), (0, out_p - out_dim)).reshape(1, out_p)

    # Token ids, time-major, padded batch with id 0 (padded rows are discarded).
    ids = jnp.pad(jnp.transpose(text).astype(jnp.int32),
                  ((0, 0), (0, batch_p - batch)))                      # (seq, batch_p)

    vmem = pltpu.MemorySpace.VMEM
    smem = pltpu.MemorySpace.SMEM
    out_padded = pl.pallas_call(
        rnn_fc_kernel,
        out_shape=jax.ShapeDtypeStruct((batch_p, out_p), jnp.float32),
        in_specs=[
            pl.BlockSpec(memory_space=smem),   # ids (scalar table)
            pl.BlockSpec(memory_space=vmem),   # projected embedding table
            pl.BlockSpec(memory_space=vmem),   # W_hh^T
            pl.BlockSpec(memory_space=vmem),   # W_fc^T
            pl.BlockSpec(memory_space=vmem),   # b_fc
        ],
        out_specs=pl.BlockSpec(memory_space=vmem),
    )(ids, proj, whh_t, wfc_t, bfc)

    return out_padded[:batch, :out_dim]


def _reference_forward(text, params):
    """Pure-JAX reference mirroring PyTorch nn.RNN + nn.Linear semantics."""
    embedded = jnp.take(params["embedding"], text, axis=0)  # (batch, seq, emb)
    w_ih, w_hh = params["w_ih"], params["w_hh"]
    b_ih, b_hh = params["b_ih"], params["b_hh"]
    batch = text.shape[0]
    hidden = w_hh.shape[0]

    def step(h, x_t):
        h_new = jnp.tanh(x_t @ w_ih.T + b_ih + h @ w_hh.T + b_hh)
        return h_new, None

    x_tm = jnp.transpose(embedded, (1, 0, 2))  # (seq, batch, emb)
    h0 = jnp.zeros((batch, hidden), jnp.float32)
    h_final, _ = lax.scan(step, h0, x_tm)
    return h_final @ params["w_fc"].T + params["b_fc"]


if __name__ == "__main__":
    # Small, deterministic configuration.
    vocab_size, embedding_dim, hidden_dim, output_dim = 50, 32, 32, 4
    batch, seq = 2, 8

    key = jax.random.PRNGKey(0)
    keys = jax.random.split(key, 8)
    k_rnn = 1.0 / np.sqrt(hidden_dim)
    k_fc = 1.0 / np.sqrt(hidden_dim)

    params = {
        "embedding": jax.random.normal(keys[0], (vocab_size, embedding_dim), jnp.float32),
        "w_ih": jax.random.uniform(keys[1], (hidden_dim, embedding_dim), jnp.float32, -k_rnn, k_rnn),
        "w_hh": jax.random.uniform(keys[2], (hidden_dim, hidden_dim), jnp.float32, -k_rnn, k_rnn),
        "b_ih": jax.random.uniform(keys[3], (hidden_dim,), jnp.float32, -k_rnn, k_rnn),
        "b_hh": jax.random.uniform(keys[4], (hidden_dim,), jnp.float32, -k_rnn, k_rnn),
        "w_fc": jax.random.uniform(keys[5], (output_dim, hidden_dim), jnp.float32, -k_fc, k_fc),
        "b_fc": jax.random.uniform(keys[6], (output_dim,), jnp.float32, -k_fc, k_fc),
    }

    text = jax.random.randint(keys[7], (batch, seq), 0, vocab_size, dtype=jnp.int32)

    out = rnn_model_forward(text, params)
    out = jax.block_until_ready(out)

    ref = jax.block_until_ready(_reference_forward(text, params))
    assert out.shape == (batch, output_dim)
    np.testing.assert_allclose(np.asarray(out), np.asarray(ref), rtol=1e-5, atol=1e-5)

    print("KERNEL_OK")
</pallas_src>

<mosaic_0001>
module attributes {stable_mosaic.version = 11 : i64} {
  func.func @rnn_fc_kernel(%arg0: memref<8x8xi32, #tpu.memory_space<smem>>, %arg1: memref<50x1x128xf32, #tpu.memory_space<vmem>>, %arg2: memref<128x128xf32, #tpu.memory_space<vmem>>, %arg3: memref<128x128xf32, #tpu.memory_space<vmem>>, %arg4: memref<1x128xf32, #tpu.memory_space<vmem>>, %arg5: memref<8x128xf32, #tpu.memory_space<vmem>>) attributes {dimension_semantics = [], scalar_prefetch = 0 : i64, scratch_operands = 0 : i64, tpu.core_type = #tpu.core_type<tc>} {
    %c0 = arith.constant 0 : index
    %c0_0 = arith.constant 0 : index
    %0 = vector.load %arg2[%c0, %c0_0] : memref<128x128xf32, #tpu.memory_space<vmem>>, vector<128x128xf32>
    %cst = arith.constant 0.000000e+00 : f32
    %1 = vector.broadcast %cst : f32 to vector<8x128xf32>
    %c0_1 = arith.constant 0 : index
    %c0_2 = arith.constant 0 : index
    %2 = memref.load %arg0[%c0_1, %c0_2] : memref<8x8xi32, #tpu.memory_space<smem>>
    %3 = arith.index_cast %2 : i32 to index
    %c0_3 = arith.constant 0 : index
    %c0_4 = arith.constant 0 : index
    %4 = vector.load %arg1[%3, %c0_3, %c0_4] : memref<50x1x128xf32, #tpu.memory_space<vmem>>, vector<1x1x128xf32>
    %5 = vector.shape_cast %4 : vector<1x1x128xf32> to vector<1x128xf32>
    %c0_5 = arith.constant 0 : index
    %c1 = arith.constant 1 : index
    %6 = memref.load %arg0[%c0_5, %c1] : memref<8x8xi32, #tpu.memory_space<smem>>
    %7 = arith.index_cast %6 : i32 to index
    %c0_6 = arith.constant 0 : index
    %c0_7 = arith.constant 0 : index
    %8 = vector.load %arg1[%7, %c0_6, %c0_7] : memref<50x1x128xf32, #tpu.memory_space<vmem>>, vector<1x1x128xf32>
    %9 = vector.shape_cast %8 : vector<1x1x128xf32> to vector<1x128xf32>
    %c0_8 = arith.constant 0 : index
    %c2 = arith.constant 2 : index
    %10 = memref.load %arg0[%c0_8, %c2] : memref<8x8xi32, #tpu.memory_space<smem>>
    %11 = arith.index_cast %10 : i32 to index
    %c0_9 = arith.constant 0 : index
    %c0_10 = arith.constant 0 : index
    %12 = vector.load %arg1[%11, %c0_9, %c0_10] : memref<50x1x128xf32, #tpu.memory_space<vmem>>, vector<1x1x128xf32>
    %13 = vector.shape_cast %12 : vector<1x1x128xf32> to vector<1x128xf32>
    %c0_11 = arith.constant 0 : index
    %c3 = arith.constant 3 : index
    %14 = memref.load %arg0[%c0_11, %c3] : memref<8x8xi32, #tpu.memory_space<smem>>
    %15 = arith.index_cast %14 : i32 to index
    %c0_12 = arith.constant 0 : index
    %c0_13 = arith.constant 0 : index
    %16 = vector.load %arg1[%15, %c0_12, %c0_13] : memref<50x1x128xf32, #tpu.memory_space<vmem>>, vector<1x1x128xf32>
    %17 = vector.shape_cast %16 : vector<1x1x128xf32> to vector<1x128xf32>
    %c0_14 = arith.constant 0 : index
    %c4 = arith.constant 4 : index
    %18 = memref.load %arg0[%c0_14, %c4] : memref<8x8xi32, #tpu.memory_space<smem>>
    %19 = arith.index_cast %18 : i32 to index
    %c0_15 = arith.constant 0 : index
    %c0_16 = arith.constant 0 : index
    %20 = vector.load %arg1[%19, %c0_15, %c0_16] : memref<50x1x128xf32, #tpu.memory_space<vmem>>, vector<1x1x128xf32>
    %21 = vector.shape_cast %20 : vector<1x1x128xf32> to vector<1x128xf32>
    %c0_17 = arith.constant 0 : index
    %c5 = arith.constant 5 : index
    %22 = memref.load %arg0[%c0_17, %c5] : memref<8x8xi32, #tpu.memory_space<smem>>
    %23 = arith.index_cast %22 : i32 to index
    %c0_18 = arith.constant 0 : index
    %c0_19 = arith.constant 0 : index
    %24 = vector.load %arg1[%23, %c0_18, %c0_19] : memref<50x1x128xf32, #tpu.memory_space<vmem>>, vector<1x1x128xf32>
    %25 = vector.shape_cast %24 : vector<1x1x128xf32> to vector<1x128xf32>
    %c0_20 = arith.constant 0 : index
    %c6 = arith.constant 6 : index
    %26 = memref.load %arg0[%c0_20, %c6] : memref<8x8xi32, #tpu.memory_space<smem>>
    %27 = arith.index_cast %26 : i32 to index
    %c0_21 = arith.constant 0 : index
    %c0_22 = arith.constant 0 : index
    %28 = vector.load %arg1[%27, %c0_21, %c0_22] : memref<50x1x128xf32, #tpu.memory_space<vmem>>, vector<1x1x128xf32>
    %29 = vector.shape_cast %28 : vector<1x1x128xf32> to vector<1x128xf32>
    %c0_23 = arith.constant 0 : index
    %c7 = arith.constant 7 : index
    %30 = memref.load %arg0[%c0_23, %c7] : memref<8x8xi32, #tpu.memory_space<smem>>
    %31 = arith.index_cast %30 : i32 to index
    %c0_24 = arith.constant 0 : index
    %c0_25 = arith.constant 0 : index
    %32 = vector.load %arg1[%31, %c0_24, %c0_25] : memref<50x1x128xf32, #tpu.memory_space<vmem>>, vector<1x1x128xf32>
    %33 = vector.shape_cast %32 : vector<1x1x128xf32> to vector<1x128xf32>
    %34 = tpu.concatenate %5, %9, %13, %17, %21, %25, %29, %33 in 0 : vector<1x128xf32>, vector<1x128xf32>, vector<1x128xf32>, vector<1x128xf32>, vector<1x128xf32>, vector<1x128xf32>, vector<1x128xf32>, vector<1x128xf32> -> vector<8x128xf32>
    %cst_26 = arith.constant dense<0.000000e+00> : vector<8x128xf32>
    %35 = tpu.matmul %1, %0, %cst_26 {dimension_numbers = #tpu.dot_dimension_numbers<[1], [0], [0], [1], [0, 0, 1, 1], [], []>} : vector<8x128xf32>, vector<128x128xf32>, vector<8x128xf32> -> vector<8x128xf32>
    %36 = arith.addf %34, %35 : vector<8x128xf32>
    %37 = math.tanh %36 : vector<8x128xf32>
    %c1_27 = arith.constant 1 : index
    %c0_28 = arith.constant 0 : index
    %38 = memref.load %arg0[%c1_27, %c0_28] : memref<8x8xi32, #tpu.memory_space<smem>>
    %39 = arith.index_cast %38 : i32 to index
    %c0_29 = arith.constant 0 : index
    %c0_30 = arith.constant 0 : index
    %40 = vector.load %arg1[%39, %c0_29, %c0_30] : memref<50x1x128xf32, #tpu.memory_space<vmem>>, vector<1x1x128xf32>
    %41 = vector.shape_cast %40 : vector<1x1x128xf32> to vector<1x128xf32>
    %c1_31 = arith.constant 1 : index
    %c1_32 = arith.constant 1 : index
    %42 = memref.load %arg0[%c1_31, %c1_32] : memref<8x8xi32, #tpu.memory_space<smem>>
    %43 = arith.index_cast %42 : i32 to index
    %c0_33 = arith.constant 0 : index
    %c0_34 = arith.constant 0 : index
    %44 = vector.load %arg1[%43, %c0_33, %c0_34] : memref<50x1x128xf32, #tpu.memory_space<vmem>>, vector<1x1x128xf32>
    %45 = vector.shape_cast %44 : vector<1x1x128xf32> to vector<1x128xf32>
    %c1_35 = arith.constant 1 : index
    %c2_36 = arith.constant 2 : index
    %46 = memref.load %arg0[%c1_35, %c2_36] : memref<8x8xi32, #tpu.memory_space<smem>>
    %47 = arith.index_cast %46 : i32 to index
    %c0_37 = arith.constant 0 : index
    %c0_38 = arith.constant 0 : index
    %48 = vector.load %arg1[%47, %c0_37, %c0_38] : memref<50x1x128xf32, #tpu.memory_space<vmem>>, vector<1x1x128xf32>
    %49 = vector.shape_cast %48 : vector<1x1x128xf32> to vector<1x128xf32>
    %c1_39 = arith.constant 1 : index
    %c3_40 = arith.constant 3 : index
    %50 = memref.load %arg0[%c1_39, %c3_40] : memref<8x8xi32, #tpu.memory_space<smem>>
    %51 = arith.index_cast %50 : i32 to index
    %c0_41 = arith.constant 0 : index
    %c0_42 = arith.constant 0 : index
    %52 = vector.load %arg1[%51, %c0_41, %c0_42] : memref<50x1x128xf32, #tpu.memory_space<vmem>>, vector<1x1x128xf32>
    %53 = vector.shape_cast %52 : vector<1x1x128xf32> to vector<1x128xf32>
    %c1_43 = arith.constant 1 : index
    %c4_44 = arith.constant 4 : index
    %54 = memref.load %arg0[%c1_43, %c4_44] : memref<8x8xi32, #tpu.memory_space<smem>>
    %55 = arith.index_cast %54 : i32 to index
    %c0_45 = arith.constant 0 : index
    %c0_46 = arith.constant 0 : index
    %56 = vector.load %arg1[%55, %c0_45, %c0_46] : memref<50x1x128xf32, #tpu.memory_space<vmem>>, vector<1x1x128xf32>
    %57 = vector.shape_cast %56 : vector<1x1x128xf32> to vector<1x128xf32>
    %c1_47 = arith.constant 1 : index
    %c5_48 = arith.constant 5 : index
    %58 = memref.load %arg0[%c1_47, %c5_48] : memref<8x8xi32, #tpu.memory_space<smem>>
    %59 = arith.index_cast %58 : i32 to index
    %c0_49 = arith.constant 0 : index
    %c0_50 = arith.constant 0 : index
    %60 = vector.load %arg1[%59, %c0_49, %c0_50] : memref<50x1x128xf32, #tpu.memory_space<vmem>>, vector<1x1x128xf32>
    %61 = vector.shape_cast %60 : vector<1x1x128xf32> to vector<1x128xf32>
    %c1_51 = arith.constant 1 : index
    %c6_52 = arith.constant 6 : index
    %62 = memref.load %arg0[%c1_51, %c6_52] : memref<8x8xi32, #tpu.memory_space<smem>>
    %63 = arith.index_cast %62 : i32 to index
    %c0_53 = arith.constant 0 : index
    %c0_54 = arith.constant 0 : index
    %64 = vector.load %arg1[%63, %c0_53, %c0_54] : memref<50x1x128xf32, #tpu.memory_space<vmem>>, vector<1x1x128xf32>
    %65 = vector.shape_cast %64 : vector<1x1x128xf32> to vector<1x128xf32>
    %c1_55 = arith.constant 1 : index
    %c7_56 = arith.constant 7 : index
    %66 = memref.load %arg0[%c1_55, %c7_56] : memref<8x8xi32, #tpu.memory_space<smem>>
    %67 = arith.index_cast %66 : i32 to index
    %c0_57 = arith.constant 0 : index
    %c0_58 = arith.constant 0 : index
    %68 = vector.load %arg1[%67, %c0_57, %c0_58] : memref<50x1x128xf32, #tpu.memory_space<vmem>>, vector<1x1x128xf32>
    %69 = vector.shape_cast %68 : vector<1x1x128xf32> to vector<1x128xf32>
    %70 = tpu.concatenate %41, %45, %49, %53, %57, %61, %65, %69 in 0 : vector<1x128xf32>, vector<1x128xf32>, vector<1x128xf32>, vector<1x128xf32>, vector<1x128xf32>, vector<1x128xf32>, vector<1x128xf32>, vector<1x128xf32> -> vector<8x128xf32>
    %cst_59 = arith.constant dense<0.000000e+00> : vector<8x128xf32>
    %71 = tpu.matmul %37, %0, %cst_59 {dimension_numbers = #tpu.dot_dimension_numbers<[1], [0], [0], [1], [0, 0, 1, 1], [], []>} : vector<8x128xf32>, vector<128x128xf32>, vector<8x128xf32> -> vector<8x128xf32>
    %72 = arith.addf %70, %71 : vector<8x128xf32>
    %73 = math.tanh %72 : vector<8x128xf32>
    %c2_60 = arith.constant 2 : index
    %c0_61 = arith.constant 0 : index
    %74 = memref.load %arg0[%c2_60, %c0_61] : memref<8x8xi32, #tpu.memory_space<smem>>
    %75 = arith.index_cast %74 : i32 to index
    %c0_62 = arith.constant 0 : index
    %c0_63 = arith.constant 0 : index
    %76 = vector.load %arg1[%75, %c0_62, %c0_63] : memref<50x1x128xf32, #tpu.memory_space<vmem>>, vector<1x1x128xf32>
    %77 = vector.shape_cast %76 : vector<1x1x128xf32> to vector<1x128xf32>
    %c2_64 = arith.constant 2 : index
    %c1_65 = arith.constant 1 : index
    %78 = memref.load %arg0[%c2_64, %c1_65] : memref<8x8xi32, #tpu.memory_space<smem>>
    %79 = arith.index_cast %78 : i32 to index
    %c0_66 = arith.constant 0 : index
    %c0_67 = arith.constant 0 : index
    %80 = vector.load %arg1[%79, %c0_66, %c0_67] : memref<50x1x128xf32, #tpu.memory_space<vmem>>, vector<1x1x128xf32>
    %81 = vector.shape_cast %80 : vector<1x1x128xf32> to vector<1x128xf32>
    %c2_68 = arith.constant 2 : index
    %c2_69 = arith.constant 2 : index
    %82 = memref.load %arg0[%c2_68, %c2_69] : memref<8x8xi32, #tpu.memory_space<smem>>
    %83 = arith.index_cast %82 : i32 to index
    %c0_70 = arith.constant 0 : index
    %c0_71 = arith.constant 0 : index
    %84 = vector.load %arg1[%83, %c0_70, %c0_71] : memref<50x1x128xf32, #tpu.memory_space<vmem>>, vector<1x1x128xf32>
    %85 = vector.shape_cast %84 : vector<1x1x128xf32> to vector<1x128xf32>
    %c2_72 = arith.constant 2 : index
    %c3_73 = arith.constant 3 : index
    %86 = memref.load %arg0[%c2_72, %c3_73] : memref<8x8xi32, #tpu.memory_space<smem>>
    %87 = arith.index_cast %86 : i32 to index
    %c0_74 = arith.constant 0 : index
    %c0_75 = arith.constant 0 : index
    %88 = vector.load %arg1[%87, %c0_74, %c0_75] : memref<50x1x128xf32, #tpu.memory_space<vmem>>, vector<1x1x128xf32>
    %89 = vector.shape_cast %88 : vector<1x1x128xf32> to vector<1x128xf32>
    %c2_76 = arith.constant 2 : index
    %c4_77 = arith.constant 4 : index
    %90 = memref.load %arg0[%c2_76, %c4_77] : memref<8x8xi32, #tpu.memory_space<smem>>
    %91 = arith.index_cast %90 : i32 to index
    %c0_78 = arith.constant 0 : index
    %c0_79 = arith.constant 0 : index
    %92 = vector.load %arg1[%91, %c0_78, %c0_79] : memref<50x1x128xf32, #tpu.memory_space<vmem>>, vector<1x1x128xf32>
    %93 = vector.shape_cast %92 : vector<1x1x128xf32> to vector<1x128xf32>
    %c2_80 = arith.constant 2 : index
    %c5_81 = arith.constant 5 : index
    %94 = memref.load %arg0[%c2_80, %c5_81] : memref<8x8xi32, #tpu.memory_space<smem>>
    %95 = arith.index_cast %94 : i32 to index
    %c0_82 = arith.constant 0 : index
    %c0_83 = arith.constant 0 : index
    %96 = vector.load %arg1[%95, %c0_82, %c0_83] : memref<50x1x128xf32, #tpu.memory_space<vmem>>, vector<1x1x128xf32>
    %97 = vector.shape_cast %96 : vector<1x1x128xf32> to vector<1x128xf32>
    %c2_84 = arith.constant 2 : index
    %c6_85 = arith.constant 6 : index
    %98 = memref.load %arg0[%c2_84, %c6_85] : memref<8x8xi32, #tpu.memory_space<smem>>
    %99 = arith.index_cast %98 : i32 to index
    %c0_86 = arith.constant 0 : index
    %c0_87 = arith.constant 0 : index
    %100 = vector.load %arg1[%99, %c0_86, %c0_87] : memref<50x1x128xf32, #tpu.memory_space<vmem>>, vector<1x1x128xf32>
    %101 = vector.shape_cast %100 : vector<1x1x128xf32> to vector<1x128xf32>
    %c2_88 = arith.constant 2 : index
    %c7_89 = arith.constant 7 : index
    %102 = memref.load %arg0[%c2_88, %c7_89] : memref<8x8xi32, #tpu.memory_space<smem>>
    %103 = arith.index_cast %102 : i32 to index
    %c0_90 = arith.constant 0 : index
    %c0_91 = arith.constant 0 : index
    %104 = vector.load %arg1[%103, %c0_90, %c0_91] : memref<50x1x128xf32, #tpu.memory_space<vmem>>, vector<1x1x128xf32>
    %105 = vector.shape_cast %104 : vector<1x1x128xf32> to vector<1x128xf32>
    %106 = tpu.concatenate %77, %81, %85, %89, %93, %97, %101, %105 in 0 : vector<1x128xf32>, vector<1x128xf32>, vector<1x128xf32>, vector<1x128xf32>, vector<1x128xf32>, vector<1x128xf32>, vector<1x128xf32>, vector<1x128xf32> -> vector<8x128xf32>
    %cst_92 = arith.constant dense<0.000000e+00> : vector<8x128xf32>
    %107 = tpu.matmul %73, %0, %cst_92 {dimension_numbers = #tpu.dot_dimension_numbers<[1], [0], [0], [1], [0, 0, 1, 1], [], []>} : vector<8x128xf32>, vector<128x128xf32>, vector<8x128xf32> -> vector<8x128xf32>
    %108 = arith.addf %106, %107 : vector<8x128xf32>
    %109 = math.tanh %108 : vector<8x128xf32>
    %c3_93 = arith.constant 3 : index
    %c0_94 = arith.constant 0 : index
    %110 = memref.load %arg0[%c3_93, %c0_94] : memref<8x8xi32, #tpu.memory_space<smem>>
    %111 = arith.index_cast %110 : i32 to index
    %c0_95 = arith.constant 0 : index
    %c0_96 = arith.constant 0 : index
    %112 = vector.load %arg1[%111, %c0_95, %c0_96] : memref<50x1x128xf32, #tpu.memory_space<vmem>>, vector<1x1x128xf32>
    %113 = vector.shape_cast %112 : vector<1x1x128xf32> to vector<1x128xf32>
    %c3_97 = arith.constant 3 : index
    %c1_98 = arith.constant 1 : index
    %114 = memref.load %arg0[%c3_97, %c1_98] : memref<8x8xi32, #tpu.memory_space<smem>>
    %115 = arith.index_cast %114 : i32 to index
    %c0_99 = arith.constant 0 : index
    %c0_100 = arith.constant 0 : index
    %116 = vector.load %arg1[%115, %c0_99, %c0_100] : memref<50x1x128xf32, #tpu.memory_space<vmem>>, vector<1x1x128xf32>
    %117 = vector.shape_cast %116 : vector<1x1x128xf32> to vector<1x128xf32>
    %c3_101 = arith.constant 3 : index
    %c2_102 = arith.constant 2 : index
    %118 = memref.load %arg0[%c3_101, %c2_102] : memref<8x8xi32, #tpu.memory_space<smem>>
    %119 = arith.index_cast %118 : i32 to index
    %c0_103 = arith.constant 0 : index
    %c0_104 = arith.constant 0 : index
    %120 = vector.load %arg1[%119, %c0_103, %c0_104] : memref<50x1x128xf32, #tpu.memory_space<vmem>>, vector<1x1x128xf32>
    %121 = vector.shape_cast %120 : vector<1x1x128xf32> to vector<1x128xf32>
    %c3_105 = arith.constant 3 : index
    %c3_106 = arith.constant 3 : index
    %122 = memref.load %arg0[%c3_105, %c3_106] : memref<8x8xi32, #tpu.memory_space<smem>>
    %123 = arith.index_cast %122 : i32 to index
    %c0_107 = arith.constant 0 : index
    %c0_108 = arith.constant 0 : index
    %124 = vector.load %arg1[%123, %c0_107, %c0_108] : memref<50x1x128xf32, #tpu.memory_space<vmem>>, vector<1x1x128xf32>
    %125 = vector.shape_cast %124 : vector<1x1x128xf32> to vector<1x128xf32>
    %c3_109 = arith.constant 3 : index
    %c4_110 = arith.constant 4 : index
    %126 = memref.load %arg0[%c3_109, %c4_110] : memref<8x8xi32, #tpu.memory_space<smem>>
    %127 = arith.index_cast %126 : i32 to index
    %c0_111 = arith.constant 0 : index
    %c0_112 = arith.constant 0 : index
    %128 = vector.load %arg1[%127, %c0_111, %c0_112] : memref<50x1x128xf32, #tpu.memory_space<vmem>>, vector<1x1x128xf32>
    %129 = vector.shape_cast %128 : vector<1x1x128xf32> to vector<1x128xf32>
    %c3_113 = arith.constant 3 : index
    %c5_114 = arith.constant 5 : index
    %130 = memref.load %arg0[%c3_113, %c5_114] : memref<8x8xi32, #tpu.memory_space<smem>>
    %131 = arith.index_cast %130 : i32 to index
    %c0_115 = arith.constant 0 : index
    %c0_116 = arith.constant 0 : index
    %132 = vector.load %arg1[%131, %c0_115, %c0_116] : memref<50x1x128xf32, #tpu.memory_space<vmem>>, vector<1x1x128xf32>
    %133 = vector.shape_cast %132 : vector<1x1x128xf32> to vector<1x128xf32>
    %c3_117 = arith.constant 3 : index
    %c6_118 = arith.constant 6 : index
    %134 = memref.load %arg0[%c3_117, %c6_118] : memref<8x8xi32, #tpu.memory_space<smem>>
    %135 = arith.index_cast %134 : i32 to index
    %c0_119 = arith.constant 0 : index
    %c0_120 = arith.constant 0 : index
    %136 = vector.load %arg1[%135, %c0_119, %c0_120] : memref<50x1x128xf32, #tpu.memory_space<vmem>>, vector<1x1x128xf32>
    %137 = vector.shape_cast %136 : vector<1x1x128xf32> to vector<1x128xf32>
    %c3_121 = arith.constant 3 : index
    %c7_122 = arith.constant 7 : index
    %138 = memref.load %arg0[%c3_121, %c7_122] : memref<8x8xi32, #tpu.memory_space<smem>>
    %139 = arith.index_cast %138 : i32 to index
    %c0_123 = arith.constant 0 : index
    %c0_124 = arith.constant 0 : index
    %140 = vector.load %arg1[%139, %c0_123, %c0_124] : memref<50x1x128xf32, #tpu.memory_space<vmem>>, vector<1x1x128xf32>
    %141 = vector.shape_cast %140 : vector<1x1x128xf32> to vector<1x128xf32>
    %142 = tpu.concatenate %113, %117, %121, %125, %129, %133, %137, %141 in 0 : vector<1x128xf32>, vector<1x128xf32>, vector<1x128xf32>, vector<1x128xf32>, vector<1x128xf32>, vector<1x128xf32>, vector<1x128xf32>, vector<1x128xf32> -> vector<8x128xf32>
    %cst_125 = arith.constant dense<0.000000e+00> : vector<8x128xf32>
    %143 = tpu.matmul %109, %0, %cst_125 {dimension_numbers = #tpu.dot_dimension_numbers<[1], [0], [0], [1], [0, 0, 1, 1], [], []>} : vector<8x128xf32>, vector<128x128xf32>, vector<8x128xf32> -> vector<8x128xf32>
    %144 = arith.addf %142, %143 : vector<8x128xf32>
    %145 = math.tanh %144 : vector<8x128xf32>
    %c4_126 = arith.constant 4 : index
    %c0_127 = arith.constant 0 : index
    %146 = memref.load %arg0[%c4_126, %c0_127] : memref<8x8xi32, #tpu.memory_space<smem>>
    %147 = arith.index_cast %146 : i32 to index
    %c0_128 = arith.constant 0 : index
    %c0_129 = arith.constant 0 : index
    %148 = vector.load %arg1[%147, %c0_128, %c0_129] : memref<50x1x128xf32, #tpu.memory_space<vmem>>, vector<1x1x128xf32>
    %149 = vector.shape_cast %148 : vector<1x1x128xf32> to vector<1x128xf32>
    %c4_130 = arith.constant 4 : index
    %c1_131 = arith.constant 1 : index
    %150 = memref.load %arg0[%c4_130, %c1_131] : memref<8x8xi32, #tpu.memory_space<smem>>
    %151 = arith.index_cast %150 : i32 to index
    %c0_132 = arith.constant 0 : index
    %c0_133 = arith.constant 0 : index
    %152 = vector.load %arg1[%151, %c0_132, %c0_133] : memref<50x1x128xf32, #tpu.memory_space<vmem>>, vector<1x1x128xf32>
    %153 = vector.shape_cast %152 : vector<1x1x128xf32> to vector<1x128xf32>
    %c4_134 = arith.constant 4 : index
    %c2_135 = arith.constant 2 : index
    %154 = memref.load %arg0[%c4_134, %c2_135] : memref<8x8xi32, #tpu.memory_space<smem>>
    %155 = arith.index_cast %154 : i32 to index
    %c0_136 = arith.constant 0 : index
    %c0_137 = arith.constant 0 : index
    %156 = vector.load %arg1[%155, %c0_136, %c0_137] : memref<50x1x128xf32, #tpu.memory_space<vmem>>, vector<1x1x128xf32>
    %157 = vector.shape_cast %156 : vector<1x1x128xf32> to vector<1x128xf32>
    %c4_138 = arith.constant 4 : index
    %c3_139 = arith.constant 3 : index
    %158 = memref.load %arg0[%c4_138, %c3_139] : memref<8x8xi32, #tpu.memory_space<smem>>
    %159 = arith.index_cast %158 : i32 to index
    %c0_140 = arith.constant 0 : index
    %c0_141 = arith.constant 0 : index
    %160 = vector.load %arg1[%159, %c0_140, %c0_141] : memref<50x1x128xf32, #tpu.memory_space<vmem>>, vector<1x1x128xf32>
    %161 = vector.shape_cast %160 : vector<1x1x128xf32> to vector<1x128xf32>
    %c4_142 = arith.constant 4 : index
    %c4_143 = arith.constant 4 : index
    %162 = memref.load %arg0[%c4_142, %c4_143] : memref<8x8xi32, #tpu.memory_space<smem>>
    %163 = arith.index_cast %162 : i32 to index
    %c0_144 = arith.constant 0 : index
    %c0_145 = arith.constant 0 : index
    %164 = vector.load %arg1[%163, %c0_144, %c0_145] : memref<50x1x128xf32, #tpu.memory_space<vmem>>, vector<1x1x128xf32>
    %165 = vector.shape_cast %164 : vector<1x1x128xf32> to vector<1x128xf32>
    %c4_146 = arith.constant 4 : index
    %c5_147 = arith.constant 5 : index
    %166 = memref.load %arg0[%c4_146, %c5_147] : memref<8x8xi32, #tpu.memory_space<smem>>
    %167 = arith.index_cast %166 : i32 to index
    %c0_148 = arith.constant 0 : index
    %c0_149 = arith.constant 0 : index
    %168 = vector.load %arg1[%167, %c0_148, %c0_149] : memref<50x1x128xf32, #tpu.memory_space<vmem>>, vector<1x1x128xf32>
    %169 = vector.shape_cast %168 : vector<1x1x128xf32> to vector<1x128xf32>
    %c4_150 = arith.constant 4 : index
    %c6_151 = arith.constant 6 : index
    %170 = memref.load %arg0[%c4_150, %c6_151] : memref<8x8xi32, #tpu.memory_space<smem>>
    %171 = arith.index_cast %170 : i32 to index
    %c0_152 = arith.constant 0 : index
    %c0_153 = arith.constant 0 : index
    %172 = vector.load %arg1[%171, %c0_152, %c0_153] : memref<50x1x128xf32, #tpu.memory_space<vmem>>, vector<1x1x128xf32>
    %173 = vector.shape_cast %172 : vector<1x1x128xf32> to vector<1x128xf32>
    %c4_154 = arith.constant 4 : index
    %c7_155 = arith.constant 7 : index
    %174 = memref.load %arg0[%c4_154, %c7_155] : memref<8x8xi32, #tpu.memory_space<smem>>
    %175 = arith.index_cast %174 : i32 to index
    %c0_156 = arith.constant 0 : index
    %c0_157 = arith.constant 0 : index
    %176 = vector.load %arg1[%175, %c0_156, %c0_157] : memref<50x1x128xf32, #tpu.memory_space<vmem>>, vector<1x1x128xf32>
    %177 = vector.shape_cast %176 : vector<1x1x128xf32> to vector<1x128xf32>
    %178 = tpu.concatenate %149, %153, %157, %161, %165, %169, %173, %177 in 0 : vector<1x128xf32>, vector<1x128xf32>, vector<1x128xf32>, vector<1x128xf32>, vector<1x128xf32>, vector<1x128xf32>, vector<1x128xf32>, vector<1x128xf32> -> vector<8x128xf32>
    %cst_158 = arith.constant dense<0.000000e+00> : vector<8x128xf32>
    %179 = tpu.matmul %145, %0, %cst_158 {dimension_numbers = #tpu.dot_dimension_numbers<[1], [0], [0], [1], [0, 0, 1, 1], [], []>} : vector<8x128xf32>, vector<128x128xf32>, vector<8x128xf32> -> vector<8x128xf32>
    %180 = arith.addf %178, %179 : vector<8x128xf32>
    %181 = math.tanh %180 : vector<8x128xf32>
    %c5_159 = arith.constant 5 : index
    %c0_160 = arith.constant 0 : index
    %182 = memref.load %arg0[%c5_159, %c0_160] : memref<8x8xi32, #tpu.memory_space<smem>>
    %183 = arith.index_cast %182 : i32 to index
    %c0_161 = arith.constant 0 : index
    %c0_162 = arith.constant 0 : index
    %184 = vector.load %arg1[%183, %c0_161, %c0_162] : memref<50x1x128xf32, #tpu.memory_space<vmem>>, vector<1x1x128xf32>
    %185 = vector.shape_cast %184 : vector<1x1x128xf32> to vector<1x128xf32>
    %c5_163 = arith.constant 5 : index
    %c1_164 = arith.constant 1 : index
    %186 = memref.load %arg0[%c5_163, %c1_164] : memref<8x8xi32, #tpu.memory_space<smem>>
    %187 = arith.index_cast %186 : i32 to index
    %c0_165 = arith.constant 0 : index
    %c0_166 = arith.constant 0 : index
    %188 = vector.load %arg1[%187, %c0_165, %c0_166] : memref<50x1x128xf32, #tpu.memory_space<vmem>>, vector<1x1x128xf32>
    %189 = vector.shape_cast %188 : vector<1x1x128xf32> to vector<1x128xf32>
    %c5_167 = arith.constant 5 : index
    %c2_168 = arith.constant 2 : index
    %190 = memref.load %arg0[%c5_167, %c2_168] : memref<8x8xi32, #tpu.memory_space<smem>>
    %191 = arith.index_cast %190 : i32 to index
    %c0_169 = arith.constant 0 : index
    %c0_170 = arith.constant 0 : index
    %192 = vector.load %arg1[%191, %c0_169, %c0_170] : memref<50x1x128xf32, #tpu.memory_space<vmem>>, vector<1x1x128xf32>
    %193 = vector.shape_cast %192 : vector<1x1x128xf32> to vector<1x128xf32>
    %c5_171 = arith.constant 5 : index
    %c3_172 = arith.constant 3 : index
    %194 = memref.load %arg0[%c5_171, %c3_172] : memref<8x8xi32, #tpu.memory_space<smem>>
    %195 = arith.index_cast %194 : i32 to index
    %c0_173 = arith.constant 0 : index
    %c0_174 = arith.constant 0 : index
    %196 = vector.load %arg1[%195, %c0_173, %c0_174] : memref<50x1x128xf32, #tpu.memory_space<vmem>>, vector<1x1x128xf32>
    %197 = vector.shape_cast %196 : vector<1x1x128xf32> to vector<1x128xf32>
    %c5_175 = arith.constant 5 : index
    %c4_176 = arith.constant 4 : index
    %198 = memref.load %arg0[%c5_175, %c4_176] : memref<8x8xi32, #tpu.memory_space<smem>>
    %199 = arith.index_cast %198 : i32 to index
    %c0_177 = arith.constant 0 : index
    %c0_178 = arith.constant 0 : index
    %200 = vector.load %arg1[%199, %c0_177, %c0_178] : memref<50x1x128xf32, #tpu.memory_space<vmem>>, vector<1x1x128xf32>
    %201 = vector.shape_cast %200 : vector<1x1x128xf32> to vector<1x128xf32>
    %c5_179 = arith.constant 5 : index
    %c5_180 = arith.constant 5 : index
    %202 = memref.load %arg0[%c5_179, %c5_180] : memref<8x8xi32, #tpu.memory_space<smem>>
    %203 = arith.index_cast %202 : i32 to index
    %c0_181 = arith.constant 0 : index
    %c0_182 = arith.constant 0 : index
    %204 = vector.load %arg1[%203, %c0_181, %c0_182] : memref<50x1x128xf32, #tpu.memory_space<vmem>>, vector<1x1x128xf32>
    %205 = vector.shape_cast %204 : vector<1x1x128xf32> to vector<1x128xf32>
    %c5_183 = arith.constant 5 : index
    %c6_184 = arith.constant 6 : index
    %206 = memref.load %arg0[%c5_183, %c6_184] : memref<8x8xi32, #tpu.memory_space<smem>>
    %207 = arith.index_cast %206 : i32 to index
    %c0_185 = arith.constant 0 : index
    %c0_186 = arith.constant 0 : index
    %208 = vector.load %arg1[%207, %c0_185, %c0_186] : memref<50x1x128xf32, #tpu.memory_space<vmem>>, vector<1x1x128xf32>
    %209 = vector.shape_cast %208 : vector<1x1x128xf32> to vector<1x128xf32>
    %c5_187 = arith.constant 5 : index
    %c7_188 = arith.constant 7 : index
    %210 = memref.load %arg0[%c5_187, %c7_188] : memref<8x8xi32, #tpu.memory_space<smem>>
    %211 = arith.index_cast %210 : i32 to index
    %c0_189 = arith.constant 0 : index
    %c0_190 = arith.constant 0 : index
    %212 = vector.load %arg1[%211, %c0_189, %c0_190] : memref<50x1x128xf32, #tpu.memory_space<vmem>>, vector<1x1x128xf32>
    %213 = vector.shape_cast %212 : vector<1x1x128xf32> to vector<1x128xf32>
    %214 = tpu.concatenate %185, %189, %193, %197, %201, %205, %209, %213 in 0 : vector<1x128xf32>, vector<1x128xf32>, vector<1x128xf32>, vector<1x128xf32>, vector<1x128xf32>, vector<1x128xf32>, vector<1x128xf32>, vector<1x128xf32> -> vector<8x128xf32>
    %cst_191 = arith.constant dense<0.000000e+00> : vector<8x128xf32>
    %215 = tpu.matmul %181, %0, %cst_191 {dimension_numbers = #tpu.dot_dimension_numbers<[1], [0], [0], [1], [0, 0, 1, 1], [], []>} : vector<8x128xf32>, vector<128x128xf32>, vector<8x128xf32> -> vector<8x128xf32>
    %216 = arith.addf %214, %215 : vector<8x128xf32>
    %217 = math.tanh %216 : vector<8x128xf32>
    %c6_192 = arith.constant 6 : index
    %c0_193 = arith.constant 0 : index
    %218 = memref.load %arg0[%c6_192, %c0_193] : memref<8x8xi32, #tpu.memory_space<smem>>
    %219 = arith.index_cast %218 : i32 to index
    %c0_194 = arith.constant 0 : index
    %c0_195 = arith.constant 0 : index
    %220 = vector.load %arg1[%219, %c0_194, %c0_195] : memref<50x1x128xf32, #tpu.memory_space<vmem>>, vector<1x1x128xf32>
    %221 = vector.shape_cast %220 : vector<1x1x128xf32> to vector<1x128xf32>
    %c6_196 = arith.constant 6 : index
    %c1_197 = arith.constant 1 : index
    %222 = memref.load %arg0[%c6_196, %c1_197] : memref<8x8xi32, #tpu.memory_space<smem>>
    %223 = arith.index_cast %222 : i32 to index
    %c0_198 = arith.constant 0 : index
    %c0_199 = arith.constant 0 : index
    %224 = vector.load %arg1[%223, %c0_198, %c0_199] : memref<50x1x128xf32, #tpu.memory_space<vmem>>, vector<1x1x128xf32>
    %225 = vector.shape_cast %224 : vector<1x1x128xf32> to vector<1x128xf32>
    %c6_200 = arith.constant 6 : index
    %c2_201 = arith.constant 2 : index
    %226 = memref.load %arg0[%c6_200, %c2_201] : memref<8x8xi32, #tpu.memory_space<smem>>
    %227 = arith.index_cast %226 : i32 to index
    %c0_202 = arith.constant 0 : index
    %c0_203 = arith.constant 0 : index
    %228 = vector.load %arg1[%227, %c0_202, %c0_203] : memref<50x1x128xf32, #tpu.memory_space<vmem>>, vector<1x1x128xf32>
    %229 = vector.shape_cast %228 : vector<1x1x128xf32> to vector<1x128xf32>
    %c6_204 = arith.constant 6 : index
    %c3_205 = arith.constant 3 : index
    %230 = memref.load %arg0[%c6_204, %c3_205] : memref<8x8xi32, #tpu.memory_space<smem>>
    %231 = arith.index_cast %230 : i32 to index
    %c0_206 = arith.constant 0 : index
    %c0_207 = arith.constant 0 : index
    %232 = vector.load %arg1[%231, %c0_206, %c0_207] : memref<50x1x128xf32, #tpu.memory_space<vmem>>, vector<1x1x128xf32>
    %233 = vector.shape_cast %232 : vector<1x1x128xf32> to vector<1x128xf32>
    %c6_208 = arith.constant 6 : index
    %c4_209 = arith.constant 4 : index
    %234 = memref.load %arg0[%c6_208, %c4_209] : memref<8x8xi32, #tpu.memory_space<smem>>
    %235 = arith.index_cast %234 : i32 to index
    %c0_210 = arith.constant 0 : index
    %c0_211 = arith.constant 0 : index
    %236 = vector.load %arg1[%235, %c0_210, %c0_211] : memref<50x1x128xf32, #tpu.memory_space<vmem>>, vector<1x1x128xf32>
    %237 = vector.shape_cast %236 : vector<1x1x128xf32> to vector<1x128xf32>
    %c6_212 = arith.constant 6 : index
    %c5_213 = arith.constant 5 : index
    %238 = memref.load %arg0[%c6_212, %c5_213] : memref<8x8xi32, #tpu.memory_space<smem>>
    %239 = arith.index_cast %238 : i32 to index
    %c0_214 = arith.constant 0 : index
    %c0_215 = arith.constant 0 : index
    %240 = vector.load %arg1[%239, %c0_214, %c0_215] : memref<50x1x128xf32, #tpu.memory_space<vmem>>, vector<1x1x128xf32>
    %241 = vector.shape_cast %240 : vector<1x1x128xf32> to vector<1x128xf32>
    %c6_216 = arith.constant 6 : index
    %c6_217 = arith.constant 6 : index
    %242 = memref.load %arg0[%c6_216, %c6_217] : memref<8x8xi32, #tpu.memory_space<smem>>
    %243 = arith.index_cast %242 : i32 to index
    %c0_218 = arith.constant 0 : index
    %c0_219 = arith.constant 0 : index
    %244 = vector.load %arg1[%243, %c0_218, %c0_219] : memref<50x1x128xf32, #tpu.memory_space<vmem>>, vector<1x1x128xf32>
    %245 = vector.shape_cast %244 : vector<1x1x128xf32> to vector<1x128xf32>
    %c6_220 = arith.constant 6 : index
    %c7_221 = arith.constant 7 : index
    %246 = memref.load %arg0[%c6_220, %c7_221] : memref<8x8xi32, #tpu.memory_space<smem>>
    %247 = arith.index_cast %246 : i32 to index
    %c0_222 = arith.constant 0 : index
    %c0_223 = arith.constant 0 : index
    %248 = vector.load %arg1[%247, %c0_222, %c0_223] : memref<50x1x128xf32, #tpu.memory_space<vmem>>, vector<1x1x128xf32>
    %249 = vector.shape_cast %248 : vector<1x1x128xf32> to vector<1x128xf32>
    %250 = tpu.concatenate %221, %225, %229, %233, %237, %241, %245, %249 in 0 : vector<1x128xf32>, vector<1x128xf32>, vector<1x128xf32>, vector<1x128xf32>, vector<1x128xf32>, vector<1x128xf32>, vector<1x128xf32>, vector<1x128xf32> -> vector<8x128xf32>
    %cst_224 = arith.constant dense<0.000000e+00> : vector<8x128xf32>
    %251 = tpu.matmul %217, %0, %cst_224 {dimension_numbers = #tpu.dot_dimension_numbers<[1], [0], [0], [1], [0, 0, 1, 1], [], []>} : vector<8x128xf32>, vector<128x128xf32>, vector<8x128xf32> -> vector<8x128xf32>
    %252 = arith.addf %250, %251 : vector<8x128xf32>
    %253 = math.tanh %252 : vector<8x128xf32>
    %c7_225 = arith.constant 7 : index
    %c0_226 = arith.constant 0 : index
    %254 = memref.load %arg0[%c7_225, %c0_226] : memref<8x8xi32, #tpu.memory_space<smem>>
    %255 = arith.index_cast %254 : i32 to index
    %c0_227 = arith.constant 0 : index
    %c0_228 = arith.constant 0 : index
    %256 = vector.load %arg1[%255, %c0_227, %c0_228] : memref<50x1x128xf32, #tpu.memory_space<vmem>>, vector<1x1x128xf32>
    %257 = vector.shape_cast %256 : vector<1x1x128xf32> to vector<1x128xf32>
    %c7_229 = arith.constant 7 : index
    %c1_230 = arith.constant 1 : index
    %258 = memref.load %arg0[%c7_229, %c1_230] : memref<8x8xi32, #tpu.memory_space<smem>>
    %259 = arith.index_cast %258 : i32 to index
    %c0_231 = arith.constant 0 : index
    %c0_232 = arith.constant 0 : index
    %260 = vector.load %arg1[%259, %c0_231, %c0_232] : memref<50x1x128xf32, #tpu.memory_space<vmem>>, vector<1x1x128xf32>
    %261 = vector.shape_cast %260 : vector<1x1x128xf32> to vector<1x128xf32>
    %c7_233 = arith.constant 7 : index
    %c2_234 = arith.constant 2 : index
    %262 = memref.load %arg0[%c7_233, %c2_234] : memref<8x8xi32, #tpu.memory_space<smem>>
    %263 = arith.index_cast %262 : i32 to index
    %c0_235 = arith.constant 0 : index
    %c0_236 = arith.constant 0 : index
    %264 = vector.load %arg1[%263, %c0_235, %c0_236] : memref<50x1x128xf32, #tpu.memory_space<vmem>>, vector<1x1x128xf32>
    %265 = vector.shape_cast %264 : vector<1x1x128xf32> to vector<1x128xf32>
    %c7_237 = arith.constant 7 : index
    %c3_238 = arith.constant 3 : index
    %266 = memref.load %arg0[%c7_237, %c3_238] : memref<8x8xi32, #tpu.memory_space<smem>>
    %267 = arith.index_cast %266 : i32 to index
    %c0_239 = arith.constant 0 : index
    %c0_240 = arith.constant 0 : index
    %268 = vector.load %arg1[%267, %c0_239, %c0_240] : memref<50x1x128xf32, #tpu.memory_space<vmem>>, vector<1x1x128xf32>
    %269 = vector.shape_cast %268 : vector<1x1x128xf32> to vector<1x128xf32>
    %c7_241 = arith.constant 7 : index
    %c4_242 = arith.constant 4 : index
    %270 = memref.load %arg0[%c7_241, %c4_242] : memref<8x8xi32, #tpu.memory_space<smem>>
    %271 = arith.index_cast %270 : i32 to index
    %c0_243 = arith.constant 0 : index
    %c0_244 = arith.constant 0 : index
    %272 = vector.load %arg1[%271, %c0_243, %c0_244] : memref<50x1x128xf32, #tpu.memory_space<vmem>>, vector<1x1x128xf32>
    %273 = vector.shape_cast %272 : vector<1x1x128xf32> to vector<1x128xf32>
    %c7_245 = arith.constant 7 : index
    %c5_246 = arith.constant 5 : index
    %274 = memref.load %arg0[%c7_245, %c5_246] : memref<8x8xi32, #tpu.memory_space<smem>>
    %275 = arith.index_cast %274 : i32 to index
    %c0_247 = arith.constant 0 : index
    %c0_248 = arith.constant 0 : index
    %276 = vector.load %arg1[%275, %c0_247, %c0_248] : memref<50x1x128xf32, #tpu.memory_space<vmem>>, vector<1x1x128xf32>
    %277 = vector.shape_cast %276 : vector<1x1x128xf32> to vector<1x128xf32>
    %c7_249 = arith.constant 7 : index
    %c6_250 = arith.constant 6 : index
    %278 = memref.load %arg0[%c7_249, %c6_250] : memref<8x8xi32, #tpu.memory_space<smem>>
    %279 = arith.index_cast %278 : i32 to index
    %c0_251 = arith.constant 0 : index
    %c0_252 = arith.constant 0 : index
    %280 = vector.load %arg1[%279, %c0_251, %c0_252] : memref<50x1x128xf32, #tpu.memory_space<vmem>>, vector<1x1x128xf32>
    %281 = vector.shape_cast %280 : vector<1x1x128xf32> to vector<1x128xf32>
    %c7_253 = arith.constant 7 : index
    %c7_254 = arith.constant 7 : index
    %282 = memref.load %arg0[%c7_253, %c7_254] : memref<8x8xi32, #tpu.memory_space<smem>>
    %283 = arith.index_cast %282 : i32 to index
    %c0_255 = arith.constant 0 : index
    %c0_256 = arith.constant 0 : index
    %284 = vector.load %arg1[%283, %c0_255, %c0_256] : memref<50x1x128xf32, #tpu.memory_space<vmem>>, vector<1x1x128xf32>
    %285 = vector.shape_cast %284 : vector<1x1x128xf32> to vector<1x128xf32>
    %286 = tpu.concatenate %257, %261, %265, %269, %273, %277, %281, %285 in 0 : vector<1x128xf32>, vector<1x128xf32>, vector<1x128xf32>, vector<1x128xf32>, vector<1x128xf32>, vector<1x128xf32>, vector<1x128xf32>, vector<1x128xf32> -> vector<8x128xf32>
    %cst_257 = arith.constant dense<0.000000e+00> : vector<8x128xf32>
    %287 = tpu.matmul %253, %0, %cst_257 {dimension_numbers = #tpu.dot_dimension_numbers<[1], [0], [0], [1], [0, 0, 1, 1], [], []>} : vector<8x128xf32>, vector<128x128xf32>, vector<8x128xf32> -> vector<8x128xf32>
    %288 = arith.addf %286, %287 : vector<8x128xf32>
    %289 = math.tanh %288 : vector<8x128xf32>
    %c0_258 = arith.constant 0 : index
    %c0_259 = arith.constant 0 : index
    %290 = vector.load %arg3[%c0_258, %c0_259] : memref<128x128xf32, #tpu.memory_space<vmem>>, vector<128x128xf32>
    %cst_260 = arith.constant dense<0.000000e+00> : vector<8x128xf32>
    %291 = tpu.matmul %289, %290, %cst_260 {dimension_numbers = #tpu.dot_dimension_numbers<[1], [0], [0], [1], [0, 0, 1, 1], [], []>} : vector<8x128xf32>, vector<128x128xf32>, vector<8x128xf32> -> vector<8x128xf32>
    %c0_261 = arith.constant 0 : index
    %c0_262 = arith.constant 0 : index
    %292 = vector.load %arg4[%c0_261, %c0_262] : memref<1x128xf32, #tpu.memory_space<vmem>>, vector<1x128xf32>
    %293 = vector.broadcast %292 : vector<1x128xf32> to vector<8x128xf32>
    %294 = arith.addf %291, %293 : vector<8x128xf32>
    %c0_263 = arith.constant 0 : index
    %c0_264 = arith.constant 0 : index
    %295 = vector.load %arg5[%c0_263, %c0_264] : memref<8x128xf32, #tpu.memory_space<vmem>>, vector<8x128xf32>
    tpu.vector_store %arg5[%c0_263, %c0_264], %294 {strides = array<i32>} : memref<8x128xf32, #tpu.memory_space<vmem>>, vector<8x128xf32>,
    return
  }
}

</mosaic_0001>

<llo_original>
// kernel: tpu_custom_call.1
$region0: #{tpu_custom_call.1}
  #allocation0 [shape = 'u32[]', space=smem, size = 0x4, offset = 0x4, fixed_abs, tag = 'smem constant byte address 0x4 - core index']
  #allocation1 [shape = 'u32[144,128]{1,0:T(1,128)}', space=vmem, size = 0x12000, scoped, tag = 'internal scratch']
  %s0 = inlined_call_operand.hbm [shape: s32[8,8], index: 0, kind: input, shape index: {}]
  %s1 = inlined_call_operand.hbm [shape: f32[50,1,128], index: 1, kind: input, shape index: {}]
  %s2 = inlined_call_operand.hbm [shape: f32[128,128], index: 2, kind: input, shape index: {}]
  %s3 = inlined_call_operand.hbm [shape: f32[128,128], index: 3, kind: input, shape index: {}]
  %s4 = inlined_call_operand.vmem [shape: f32[1,128], index: 4, kind: input, shape index: {}]
  %s5 = inlined_call_operand.hbm [shape: f32[8,128], index: 5, kind: output, shape index: {}]
  %s6 = sld [smem:[#allocation0]]
  $region46: #{tpu_custom_call.1} parent=0
    _
  %s8 = ssub.s32 1, %s6
  %s9 = scalar_select 0, %s8, %s6
  $region1: #{tpu_custom_call.1} parent=0
    #allocation2 [shape = 'u8[4096]{0}', space=smem, size = 0x1000, scoped, tag = 'input window, operand 0, single buffered']
    #allocation3 [shape = 's32[1]{0}', space=sflag, size = 0x4, scoped, tag = 'scoped memory for tpu_custom_call.1']
    #allocation4 [shape = 's32[1]{0}', space=sflag, size = 0x4, scoped, tag = 'scoped memory for tpu_custom_call.1']
    #allocation5 [shape = 's32[1]{0}', space=sflag, size = 0x4, scoped, tag = 'scoped memory for tpu_custom_call.1']
    #allocation6 [shape = 'u8[25600]{0}', space=vmem, size = 0x6400, scoped, tag = 'input window, operand 1, single buffered']
    #allocation7 [shape = 'u8[65536]{0}', space=vmem, size = 0x10000, scoped, tag = 'input window, operand 2, single buffered']
    #allocation8 [shape = 's32[1]{0}', space=sflag, size = 0x4, scoped, tag = 'scoped memory for tpu_custom_call.1']
    #allocation9 [shape = 'u8[65536]{0}', space=vmem, size = 0x10000, scoped, tag = 'input window, operand 3, single buffered']
    #allocation10 [shape = 'u8[4096]{0}', space=vmem, size = 0x1000, scoped, tag = 'output window, operand 0, single buffered']
    %10 = vsyncpa [#allocation5], 0
    %11 = vsyncpa [#allocation3], 0
    %12 = vsyncpa [#allocation8], 0
    %13 = vsyncpa [#allocation4], 0
    // Predicated region
    $region2: #{tpu_custom_call.1} parent=1 // pred_check
      _
    $region3: #{tpu_custom_call.1} parent=1 // pred_check_branch
      %15 = sbr.rel (0) target = $region5
    $region4: #{tpu_custom_call.1} parent=1 // pred_region
      %s17 = ssub.s32 128, 128
      %18 = vsyncadd [#allocation5], %s17
      %21 = dma.hbm_to_smem %s0, 128, [#allocation2], [#allocation5]
    $region5: #{tpu_custom_call.1} parent=1 // pred_fallthru
      _
    // Predicated region
    $region6: #{tpu_custom_call.1} parent=1 // pred_check
      _
    $region7: #{tpu_custom_call.1} parent=1 // pred_check_branch
      %23 = sbr.rel (0) target = $region9
    $region8: #{tpu_custom_call.1} parent=1 // pred_region
      %s25 = ssub.s32 800, 800
      %26 = vsyncadd [#allocation3], %s25
      %s27 = sshll.u32 [#allocation6], 4
      %s28 = int_to_ptr.vmem [resolvable:$true] %s27
      %33 = dma.hbm_to_vmem [thread:$0]  %s1, 800, %s28, [#allocation3], 16, 16, 1
    $region9: #{tpu_custom_call.1} parent=1 // pred_fallthru
      _
    // Predicated region
    $region10: #{tpu_custom_call.1} parent=1 // pred_check
      _
    $region11: #{tpu_custom_call.1} parent=1 // pred_check_branch
      %35 = sbr.rel (0) target = $region13
    $region12: #{tpu_custom_call.1} parent=1 // pred_region
      %s37 = ssub.s32 2048, 2048
      %38 = vsyncadd [#allocation8], %s37
      %s39 = sshll.u32 [#allocation7], 4
      %s40 = int_to_ptr.vmem [resolvable:$true] %s39
      %45 = dma.hbm_to_vmem [thread:$0]  %s2, 2048, %s40, [#allocation8], 128, 128, 8
    $region13: #{tpu_custom_call.1} parent=1 // pred_fallthru
      _
    // Predicated region
    $region14: #{tpu_custom_call.1} parent=1 // pred_check
      _
    $region15: #{tpu_custom_call.1} parent=1 // pred_check_branch
      %47 = sbr.rel (0) target = $region17
    $region16: #{tpu_custom_call.1} parent=1 // pred_region
      %s49 = ssub.s32 2048, 2048
      %50 = vsyncadd [#allocation8], %s49
      %s51 = sshll.u32 [#allocation9], 4
      %s52 = int_to_ptr.vmem [resolvable:$true] %s51
      %57 = dma.hbm_to_vmem [thread:$0]  %s3, 2048, %s52, [#allocation8], 128, 128, 8
    $region17: #{tpu_custom_call.1} parent=1 // pred_fallthru
      _
    // Predicated region
    $region18: #{tpu_custom_call.1} parent=1 // pred_check
      _
    $region19: #{tpu_custom_call.1} parent=1 // pred_check_branch
      %59 = sbr.rel (0) target = $region21
    $region20: #{tpu_custom_call.1} parent=1 // pred_region
      _
    $region21: #{tpu_custom_call.1} parent=1 // pred_fallthru
      _
    // Predicated region
    $region22: #{tpu_custom_call.1} parent=1 // pred_check
      _
    $region23: #{tpu_custom_call.1} parent=1 // pred_check_branch
      %61 = sbr.rel (0) target = $region25
    $region24: #{tpu_custom_call.1} parent=1 // pred_region
      %62 = dma.done [#allocation5], 128
    $region25: #{tpu_custom_call.1} parent=1 // pred_fallthru
      _
    // Predicated region
    $region26: #{tpu_custom_call.1} parent=1 // pred_check
      _
    $region27: #{tpu_custom_call.1} parent=1 // pred_check_branch
      %64 = sbr.rel (0) target = $region29
    $region28: #{tpu_custom_call.1} parent=1 // pred_region
      %65 = dma.done [#allocation3], 800
    $region29: #{tpu_custom_call.1} parent=1 // pred_fallthru
      _
    // Predicated region
    $region30: #{tpu_custom_call.1} parent=1 // pred_check
      _
    $region31: #{tpu_custom_call.1} parent=1 // pred_check_branch
      %67 = sbr.rel (0) target = $region33
    $region32: #{tpu_custom_call.1} parent=1 // pred_region
      %68 = dma.done [#allocation8], 2048
    $region33: #{tpu_custom_call.1} parent=1 // pred_fallthru
      _
    // Predicated region
    $region34: #{tpu_custom_call.1} parent=1 // pred_check
      _
    $region35: #{tpu_custom_call.1} parent=1 // pred_check_branch
      %70 = sbr.rel (0) target = $region37
    $region36: #{tpu_custom_call.1} parent=1 // pred_region
      %71 = dma.done [#allocation8], 2048
    $region37: #{tpu_custom_call.1} parent=1 // pred_fallthru
      _
    %72 = sfence
    %v73 = vld [vmem:[#allocation7] sm:$0xff]
    %v74 = vld [vmem:[#allocation7 + $0x8] sm:$0xff]
    %v75 = vld [vmem:[#allocation7 + $0x10] sm:$0xff]
    %v76 = vld [vmem:[#allocation7 + $0x18] sm:$0xff]
    %v77 = vld [vmem:[#allocation7 + $0x20] sm:$0xff]
    %v78 = vld [vmem:[#allocation7 + $0x28] sm:$0xff]
    %v79 = vld [vmem:[#allocation7 + $0x30] sm:$0xff]
    %v80 = vld [vmem:[#allocation7 + $0x38] sm:$0xff]
    %v81 = vld [vmem:[#allocation7 + $0x40] sm:$0xff]
    %v82 = vld [vmem:[#allocation7 + $0x48] sm:$0xff]
    %v83 = vld [vmem:[#allocation7 + $0x50] sm:$0xff]
    %v84 = vld [vmem:[#allocation7 + $0x58] sm:$0xff]
    %v85 = vld [vmem:[#allocation7 + $0x60] sm:$0xff]
    %v86 = vld [vmem:[#allocation7 + $0x68] sm:$0xff]
    %v87 = vld [vmem:[#allocation7 + $0x70] sm:$0xff]
    %v88 = vld [vmem:[#allocation7 + $0x78] sm:$0xff]
    %s89 = sld [smem:[#allocation2]]
    %s90 = scalar_lea.vmem [#allocation6], %s89
    %v91 = vld [vmem:[%s90] sm:$0x1]
    %s92 = sld [smem:[#allocation2 + $0x1]]
    %s93 = scalar_lea.vmem [#allocation6], %s92
    %v94 = vld [vmem:[%s93] sm:$0x1]
    %s95 = sld [smem:[#allocation2 + $0x2]]
    %s96 = scalar_lea.vmem [#allocation6], %s95
    %v97 = vld [vmem:[%s96] sm:$0x1]
    %s98 = sld [smem:[#allocation2 + $0x3]]
    %s99 = scalar_lea.vmem [#allocation6], %s98
    %v100 = vld [vmem:[%s99] sm:$0x1]
    %s101 = sld [smem:[#allocation2 + $0x4]]
    %s102 = scalar_lea.vmem [#allocation6], %s101
    %v103 = vld [vmem:[%s102] sm:$0x1]
    %s104 = sld [smem:[#allocation2 + $0x5]]
    %s105 = scalar_lea.vmem [#allocation6], %s104
    %v106 = vld [vmem:[%s105] sm:$0x1]
    %s107 = sld [smem:[#allocation2 + $0x6]]
    %s108 = scalar_lea.vmem [#allocation6], %s107
    %v109 = vld [vmem:[%s108] sm:$0x1]
    %s110 = sld [smem:[#allocation2 + $0x7]]
    %s111 = scalar_lea.vmem [#allocation6], %s110
    %v112 = vld [vmem:[%s111] sm:$0x1]
    %v114 = vlaneseq
    %v115 = vshrl.u32 %v114, 7
    %v116 = vsub.s32 0, %v115
    %v117 = vrot.slane %v94, %v116
    %v120 = vlaneseq
    %v121 = vshrl.u32 %v120, 7
    %v122 = vsub.s32 0, %v121
    %v123 = vrot.slane %v97, %v122
    %v126 = vlaneseq
    %v127 = vshrl.u32 %v126, 7
    %v128 = vsub.s32 0, %v127
    %v129 = vrot.slane %v100, %v128
    %v132 = vlaneseq
    %v133 = vshrl.u32 %v132, 7
    %v134 = vsub.s32 0, %v133
    %v135 = vrot.slane %v103, %v134
    %v138 = vlaneseq
    %v139 = vshrl.u32 %v138, 7
    %v140 = vsub.s32 0, %v139
    %v141 = vrot.slane %v106, %v140
    %v144 = vlaneseq
    %v145 = vshrl.u32 %v144, 7
    %v146 = vsub.s32 0, %v145
    %v147 = vrot.slane %v109, %v146
    %v150 = vlaneseq
    %v151 = vshrl.u32 %v150, 7
    %v152 = vsub.s32 0, %v151
    %v153 = vrot.slane %v112, %v152
    %vm155 = vcmask 1040384
    %v156 = vsel %vm155, %v91, %v117
    %vm157 = vcmask 1041408
    %v158 = vsel %vm157, %v156, %v123
    %vm159 = vcmask 1042432
    %v160 = vsel %vm159, %v158, %v129
    %vm161 = vcmask 1043456
    %v162 = vsel %vm161, %v160, %v135
    %vm163 = vcmask 1044480
    %v164 = vsel %vm163, %v162, %v141
    %vm165 = vcmask 1045504
    %v166 = vsel %vm165, %v164, %v147
    %vm167 = vcmask 1046528
    %v168 = vsel %vm167, %v166, %v153
    %169 = vmatprep.subr.mxu0 0.0
    %170 = vmatpush1.msra.mxu0 %v73
    %171 = vmatprep.subr.mxu0 0.0
    %172 = vmatpush1.msra.mxu0 %v74
    %173 = vmatprep.subr.mxu0 0.0
    %174 = vmatpush1.msra.mxu0 %v75
    %175 = vmatprep.subr.mxu0 0.0
    %176 = vmatpush1.msra.mxu0 %v76
    %177 = vmatprep.subr.mxu0 0.0
    %178 = vmatpush1.msra.mxu0 %v77
    %179 = vmatprep.subr.mxu0 0.0
    %180 = vmatpush1.msra.mxu0 %v78
    %181 = vmatprep.subr.mxu0 0.0
    %182 = vmatpush1.msra.mxu0 %v79
    %183 = vmatprep.subr.mxu0 0.0
    %184 = vmatpush1.msra.mxu0 %v80
    %185 = vmatprep.subr.mxu0 0.0
    %186 = vmatpush1.msra.mxu0 %v81
    %187 = vmatprep.subr.mxu0 0.0
    %188 = vmatpush1.msra.mxu0 %v82
    %189 = vmatprep.subr.mxu0 0.0
    %190 = vmatpush1.msra.mxu0 %v83
    %191 = vmatprep.subr.mxu0 0.0
    %192 = vmatpush1.msra.mxu0 %v84
    %193 = vmatprep.subr.mxu0 0.0
    %194 = vmatpush1.msra.mxu0 %v85
    %195 = vmatprep.subr.mxu0 0.0
    %196 = vmatpush1.msra.mxu0 %v86
    %197 = vmatprep.subr.mxu0 0.0
    %198 = vmatpush1.msra.mxu0 %v87
    %199 = vmatprep.subr.mxu0 0.0
    %200 = vmatpush1.msra.mxu0 %v88
    %201 = vmatprep.subr.mxu0 0.0
    %202 = vmatpush1.msra.mxu0 0.0
    %203 = vmatprep.subr.mxu0 0.0
    %204 = vmatpush1.msra.mxu0 0.0
    %205 = vmatprep.subr.mxu0 0.0
    %206 = vmatpush1.msra.mxu0 0.0
    %207 = vmatprep.subr.mxu0 0.0
    %208 = vmatpush1.msra.mxu0 0.0
    %209 = vmatprep.subr.mxu0 0.0
    %210 = vmatpush1.msra.mxu0 0.0
    %211 = vmatprep.subr.mxu0 0.0
    %212 = vmatpush1.msra.mxu0 0.0
    %213 = vmatprep.subr.mxu0 0.0
    %214 = vmatpush1.msra.mxu0 0.0
    %215 = vmatprep.subr.mxu0 0.0
    %216 = vmatpush1.msra.mxu0 0.0
    %217 = vmatprep.subr.mxu0 0.0
    %218 = vmatpush1.msra.mxu0 0.0
    %219 = vmatprep.subr.mxu0 0.0
    %220 = vmatpush1.msra.mxu0 0.0
    %221 = vmatprep.subr.mxu0 0.0
    %222 = vmatpush1.msra.mxu0 0.0
    %223 = vmatprep.subr.mxu0 0.0
    %224 = vmatpush1.msra.mxu0 0.0
    %225 = vmatprep.subr.mxu0 0.0
    %226 = vmatpush1.msra.mxu0 0.0
    %227 = vmatprep.subr.mxu0 0.0
    %228 = vmatpush1.msra.mxu0 0.0
    %229 = vmatprep.subr.mxu0 0.0
    %230 = vmatpush1.msra.mxu0 0.0
    %231 = vmatprep.subr.mxu0 0.0
    %232 = vmatpush1.msra.mxu0 0.0
    %233 = vmatprep.mubr.f32.mxu0 0.0
    %234 = vmatmul.mubr.f32.gmra.mrb[0].mxu0 0.0
    %v235 = vpop.f32.mrb[0].mxu0
    %v236 = vadd.f32 0.0, %v235
    %v237 = vpop.f32.mrb[0].mxu0
    %238 = vdwg.mxu0
    %v239 = vadd.f32 %v168, %v236
    %v240 = vtanh.pop %v239
    %s241 = sld [smem:[#allocation2 + $0x80]]
    %s242 = scalar_lea.vmem [#allocation6], %s241
    %v243 = vld [vmem:[%s242] sm:$0x1]
    %s244 = sld [smem:[#allocation2 + $0x81]]
    %s245 = scalar_lea.vmem [#allocation6], %s244
    %v246 = vld [vmem:[%s245] sm:$0x1]
    %s247 = sld [smem:[#allocation2 + $0x82]]
    %s248 = scalar_lea.vmem [#allocation6], %s247
    %v249 = vld [vmem:[%s248] sm:$0x1]
    %s250 = sld [smem:[#allocation2 + $0x83]]
    %s251 = scalar_lea.vmem [#allocation6], %s250
    %v252 = vld [vmem:[%s251] sm:$0x1]
    %s253 = sld [smem:[#allocation2 + $0x84]]
    %s254 = scalar_lea.vmem [#allocation6], %s253
    %v255 = vld [vmem:[%s254] sm:$0x1]
    %s256 = sld [smem:[#allocation2 + $0x85]]
    %s257 = scalar_lea.vmem [#allocation6], %s256
    %v258 = vld [vmem:[%s257] sm:$0x1]
    %s259 = sld [smem:[#allocation2 + $0x86]]
    %s260 = scalar_lea.vmem [#allocation6], %s259
    %v261 = vld [vmem:[%s260] sm:$0x1]
    %s262 = sld [smem:[#allocation2 + $0x87]]
    %s263 = scalar_lea.vmem [#allocation6], %s262
    %v264 = vld [vmem:[%s263] sm:$0x1]
    %v266 = vlaneseq
    %v267 = vshrl.u32 %v266, 7
    %v268 = vsub.s32 0, %v267
    %v269 = vrot.slane %v246, %v268
    %v272 = vlaneseq
    %v273 = vshrl.u32 %v272, 7
    %v274 = vsub.s32 0, %v273
    %v275 = vrot.slane %v249, %v274
    %v278 = vlaneseq
    %v279 = vshrl.u32 %v278, 7
    %v280 = vsub.s32 0, %v279
    %v281 = vrot.slane %v252, %v280
    %v284 = vlaneseq
    %v285 = vshrl.u32 %v284, 7
    %v286 = vsub.s32 0, %v285
    %v287 = vrot.slane %v255, %v286
    %v290 = vlaneseq
    %v291 = vshrl.u32 %v290, 7
    %v292 = vsub.s32 0, %v291
    %v293 = vrot.slane %v258, %v292
    %v296 = vlaneseq
    %v297 = vshrl.u32 %v296, 7
    %v298 = vsub.s32 0, %v297
    %v299 = vrot.slane %v261, %v298
    %v302 = vlaneseq
    %v303 = vshrl.u32 %v302, 7
    %v304 = vsub.s32 0, %v303
    %v305 = vrot.slane %v264, %v304
    %v307 = vsel %vm155, %v243, %v269
    %v308 = vsel %vm157, %v307, %v275
    %v309 = vsel %vm159, %v308, %v281
    %v310 = vsel %vm161, %v309, %v287
    %v311 = vsel %vm163, %v310, %v293
    %v312 = vsel %vm165, %v311, %v299
    %v313 = vsel %vm167, %v312, %v305
    %314 = vmatprep.subr.mxu0 0.0
    %315 = vmatpush1.msra.mxu0 %v73
    %316 = vmatprep.subr.mxu0 0.0
    %317 = vmatpush1.msra.mxu0 %v74
    %318 = vmatprep.subr.mxu0 0.0
    %319 = vmatpush1.msra.mxu0 %v75
    %320 = vmatprep.subr.mxu0 0.0
    %321 = vmatpush1.msra.mxu0 %v76
    %322 = vmatprep.subr.mxu0 0.0
    %323 = vmatpush1.msra.mxu0 %v77
    %324 = vmatprep.subr.mxu0 0.0
    %325 = vmatpush1.msra.mxu0 %v78
    %326 = vmatprep.subr.mxu0 0.0
    %327 = vmatpush1.msra.mxu0 %v79
    %328 = vmatprep.subr.mxu0 0.0
    %329 = vmatpush1.msra.mxu0 %v80
    %330 = vmatprep.subr.mxu0 0.0
    %331 = vmatpush1.msra.mxu0 %v81
    %332 = vmatprep.subr.mxu0 0.0
    %333 = vmatpush1.msra.mxu0 %v82
    %334 = vmatprep.subr.mxu0 0.0
    %335 = vmatpush1.msra.mxu0 %v83
    %336 = vmatprep.subr.mxu0 0.0
    %337 = vmatpush1.msra.mxu0 %v84
    %338 = vmatprep.subr.mxu0 0.0
    %339 = vmatpush1.msra.mxu0 %v85
    %340 = vmatprep.subr.mxu0 0.0
    %341 = vmatpush1.msra.mxu0 %v86
    %342 = vmatprep.subr.mxu0 0.0
    %343 = vmatpush1.msra.mxu0 %v87
    %344 = vmatprep.subr.mxu0 0.0
    %345 = vmatpush1.msra.mxu0 %v88
    %346 = vmatprep.subr.mxu0 0.0
    %347 = vmatpush1.msra.mxu0 0.0
    %348 = vmatprep.subr.mxu0 0.0
    %349 = vmatpush1.msra.mxu0 0.0
    %350 = vmatprep.subr.mxu0 0.0
    %351 = vmatpush1.msra.mxu0 0.0
    %352 = vmatprep.subr.mxu0 0.0
    %353 = vmatpush1.msra.mxu0 0.0
    %354 = vmatprep.subr.mxu0 0.0
    %355 = vmatpush1.msra.mxu0 0.0
    %356 = vmatprep.subr.mxu0 0.0
    %357 = vmatpush1.msra.mxu0 0.0
    %358 = vmatprep.subr.mxu0 0.0
    %359 = vmatpush1.msra.mxu0 0.0
    %360 = vmatprep.subr.mxu0 0.0
    %361 = vmatpush1.msra.mxu0 0.0
    %362 = vmatprep.subr.mxu0 0.0
    %363 = vmatpush1.msra.mxu0 0.0
    %364 = vmatprep.subr.mxu0 0.0
    %365 = vmatpush1.msra.mxu0 0.0
    %366 = vmatprep.subr.mxu0 0.0
    %367 = vmatpush1.msra.mxu0 0.0
    %368 = vmatprep.subr.mxu0 0.0
    %369 = vmatpush1.msra.mxu0 0.0
    %370 = vmatprep.subr.mxu0 0.0
    %371 = vmatpush1.msra.mxu0 0.0
    %372 = vmatprep.subr.mxu0 0.0
    %373 = vmatpush1.msra.mxu0 0.0
    %374 = vmatprep.subr.mxu0 0.0
    %375 = vmatpush1.msra.mxu0 0.0
    %376 = vmatprep.subr.mxu0 0.0
    %377 = vmatpush1.msra.mxu0 0.0
    %378 = vmatprep.mubr.f32.mxu0 0.0
    %379 = vmatmul.mubr.f32.gmra.mrb[0].mxu0 %v240
    %v380 = vpop.f32.mrb[0].mxu0
    %v381 = vadd.f32 0.0, %v380
    %v382 = vpop.f32.mrb[0].mxu0
    %383 = vdwg.mxu0
    %v384 = vadd.f32 %v313, %v381
    %v385 = vtanh.pop %v384
    %s386 = sld [smem:[#allocation2 + $0x100]]
    %s387 = scalar_lea.vmem [#allocation6], %s386
    %v388 = vld [vmem:[%s387] sm:$0x1]
    %s389 = sld [smem:[#allocation2 + $0x101]]
    %s390 = scalar_lea.vmem [#allocation6], %s389
    %v391 = vld [vmem:[%s390] sm:$0x1]
    %s392 = sld [smem:[#allocation2 + $0x102]]
    %s393 = scalar_lea.vmem [#allocation6], %s392
    %v394 = vld [vmem:[%s393] sm:$0x1]
    %s395 = sld [smem:[#allocation2 + $0x103]]
    %s396 = scalar_lea.vmem [#allocation6], %s395
    %v397 = vld [vmem:[%s396] sm:$0x1]
    %s398 = sld [smem:[#allocation2 + $0x104]]
    %s399 = scalar_lea.vmem [#allocation6], %s398
    %v400 = vld [vmem:[%s399] sm:$0x1]
    %s401 = sld [smem:[#allocation2 + $0x105]]
    %s402 = scalar_lea.vmem [#allocation6], %s401
    %v403 = vld [vmem:[%s402] sm:$0x1]
    %s404 = sld [smem:[#allocation2 + $0x106]]
    %s405 = scalar_lea.vmem [#allocation6], %s404
    %v406 = vld [vmem:[%s405] sm:$0x1]
    %s407 = sld [smem:[#allocation2 + $0x107]]
    %s408 = scalar_lea.vmem [#allocation6], %s407
    %v409 = vld [vmem:[%s408] sm:$0x1]
    %v411 = vlaneseq
    %v412 = vshrl.u32 %v411, 7
    %v413 = vsub.s32 0, %v412
    %v414 = vrot.slane %v391, %v413
    %v417 = vlaneseq
    %v418 = vshrl.u32 %v417, 7
    %v419 = vsub.s32 0, %v418
    %v420 = vrot.slane %v394, %v419
    %v423 = vlaneseq
    %v424 = vshrl.u32 %v423, 7
    %v425 = vsub.s32 0, %v424
    %v426 = vrot.slane %v397, %v425
    %v429 = vlaneseq
    %v430 = vshrl.u32 %v429, 7
    %v431 = vsub.s32 0, %v430
    %v432 = vrot.slane %v400, %v431
    %v435 = vlaneseq
    %v436 = vshrl.u32 %v435, 7
    %v437 = vsub.s32 0, %v436
    %v438 = vrot.slane %v403, %v437
    %v441 = vlaneseq
    %v442 = vshrl.u32 %v441, 7
    %v443 = vsub.s32 0, %v442
    %v444 = vrot.slane %v406, %v443
    %v447 = vlaneseq
    %v448 = vshrl.u32 %v447, 7
    %v449 = vsub.s32 0, %v448
    %v450 = vrot.slane %v409, %v449
    %v452 = vsel %vm155, %v388, %v414
    %v453 = vsel %vm157, %v452, %v420
    %v454 = vsel %vm159, %v453, %v426
    %v455 = vsel %vm161, %v454, %v432
    %v456 = vsel %vm163, %v455, %v438
    %v457 = vsel %vm165, %v456, %v444
    %v458 = vsel %vm167, %v457, %v450
    %459 = vmatprep.subr.mxu0 0.0
    %460 = vmatpush1.msra.mxu0 %v73
    %461 = vmatprep.subr.mxu0 0.0
    %462 = vmatpush1.msra.mxu0 %v74
    %463 = vmatprep.subr.mxu0 0.0
    %464 = vmatpush1.msra.mxu0 %v75
    %465 = vmatprep.subr.mxu0 0.0
    %466 = vmatpush1.msra.mxu0 %v76
    %467 = vmatprep.subr.mxu0 0.0
    %468 = vmatpush1.msra.mxu0 %v77
    %469 = vmatprep.subr.mxu0 0.0
    %470 = vmatpush1.msra.mxu0 %v78
    %471 = vmatprep.subr.mxu0 0.0
    %472 = vmatpush1.msra.mxu0 %v79
    %473 = vmatprep.subr.mxu0 0.0
    %474 = vmatpush1.msra.mxu0 %v80
    %475 = vmatprep.subr.mxu0 0.0
    %476 = vmatpush1.msra.mxu0 %v81
    %477 = vmatprep.subr.mxu0 0.0
    %478 = vmatpush1.msra.mxu0 %v82
    %479 = vmatprep.subr.mxu0 0.0
    %480 = vmatpush1.msra.mxu0 %v83
    %481 = vmatprep.subr.mxu0 0.0
    %482 = vmatpush1.msra.mxu0 %v84
    %483 = vmatprep.subr.mxu0 0.0
    %484 = vmatpush1.msra.mxu0 %v85
    %485 = vmatprep.subr.mxu0 0.0
    %486 = vmatpush1.msra.mxu0 %v86
    %487 = vmatprep.subr.mxu0 0.0
    %488 = vmatpush1.msra.mxu0 %v87
    %489 = vmatprep.subr.mxu0 0.0
    %490 = vmatpush1.msra.mxu0 %v88
    %491 = vmatprep.subr.mxu0 0.0
    %492 = vmatpush1.msra.mxu0 0.0
    %493 = vmatprep.subr.mxu0 0.0
    %494 = vmatpush1.msra.mxu0 0.0
    %495 = vmatprep.subr.mxu0 0.0
    %496 = vmatpush1.msra.mxu0 0.0
    %497 = vmatprep.subr.mxu0 0.0
    %498 = vmatpush1.msra.mxu0 0.0
    %499 = vmatprep.subr.mxu0 0.0
    %500 = vmatpush1.msra.mxu0 0.0
    %501 = vmatprep.subr.mxu0 0.0
    %502 = vmatpush1.msra.mxu0 0.0
    %503 = vmatprep.subr.mxu0 0.0
    %504 = vmatpush1.msra.mxu0 0.0
    %505 = vmatprep.subr.mxu0 0.0
    %506 = vmatpush1.msra.mxu0 0.0
    %507 = vmatprep.subr.mxu0 0.0
    %508 = vmatpush1.msra.mxu0 0.0
    %509 = vmatprep.subr.mxu0 0.0
    %510 = vmatpush1.msra.mxu0 0.0
    %511 = vmatprep.subr.mxu0 0.0
    %512 = vmatpush1.msra.mxu0 0.0
    %513 = vmatprep.subr.mxu0 0.0
    %514 = vmatpush1.msra.mxu0 0.0
    %515 = vmatprep.subr.mxu0 0.0
    %516 = vmatpush1.msra.mxu0 0.0
    %517 = vmatprep.subr.mxu0 0.0
    %518 = vmatpush1.msra.mxu0 0.0
    %519 = vmatprep.subr.mxu0 0.0
    %520 = vmatpush1.msra.mxu0 0.0
    %521 = vmatprep.subr.mxu0 0.0
    %522 = vmatpush1.msra.mxu0 0.0
    %523 = vmatprep.mubr.f32.mxu0 0.0
    %524 = vmatmul.mubr.f32.gmra.mrb[0].mxu0 %v385
    %v525 = vpop.f32.mrb[0].mxu0
    %v526 = vadd.f32 0.0, %v525
    %v527 = vpop.f32.mrb[0].mxu0
    %528 = vdwg.mxu0
    %v529 = vadd.f32 %v458, %v526
    %v530 = vtanh.pop %v529
    %s531 = sld [smem:[#allocation2 + $0x180]]
    %s532 = scalar_lea.vmem [#allocation6], %s531
    %v533 = vld [vmem:[%s532] sm:$0x1]
    %s534 = sld [smem:[#allocation2 + $0x181]]
    %s535 = scalar_lea.vmem [#allocation6], %s534
    %v536 = vld [vmem:[%s535] sm:$0x1]
    %s537 = sld [smem:[#allocation2 + $0x182]]
    %s538 = scalar_lea.vmem [#allocation6], %s537
    %v539 = vld [vmem:[%s538] sm:$0x1]
    %s540 = sld [smem:[#allocation2 + $0x183]]
    %s541 = scalar_lea.vmem [#allocation6], %s540
    %v542 = vld [vmem:[%s541] sm:$0x1]
    %s543 = sld [smem:[#allocation2 + $0x184]]
    %s544 = scalar_lea.vmem [#allocation6], %s543
    %v545 = vld [vmem:[%s544] sm:$0x1]
    %s546 = sld [smem:[#allocation2 + $0x185]]
    %s547 = scalar_lea.vmem [#allocation6], %s546
    %v548 = vld [vmem:[%s547] sm:$0x1]
    %s549 = sld [smem:[#allocation2 + $0x186]]
    %s550 = scalar_lea.vmem [#allocation6], %s549
    %v551 = vld [vmem:[%s550] sm:$0x1]
    %s552 = sld [smem:[#allocation2 + $0x187]]
    %s553 = scalar_lea.vmem [#allocation6], %s552
    %v554 = vld [vmem:[%s553] sm:$0x1]
    %v556 = vlaneseq
    %v557 = vshrl.u32 %v556, 7
    %v558 = vsub.s32 0, %v557
    %v559 = vrot.slane %v536, %v558
    %v562 = vlaneseq
    %v563 = vshrl.u32 %v562, 7
    %v564 = vsub.s32 0, %v563
    %v565 = vrot.slane %v539, %v564
    %v568 = vlaneseq
    %v569 = vshrl.u32 %v568, 7
    %v570 = vsub.s32 0, %v569
    %v571 = vrot.slane %v542, %v570
    %v574 = vlaneseq
    %v575 = vshrl.u32 %v574, 7
    %v576 = vsub.s32 0, %v575
    %v577 = vrot.slane %v545, %v576
    %v580 = vlaneseq
    %v581 = vshrl.u32 %v580, 7
    %v582 = vsub.s32 0, %v581
    %v583 = vrot.slane %v548, %v582
    %v586 = vlaneseq
    %v587 = vshrl.u32 %v586, 7
    %v588 = vsub.s32 0, %v587
    %v589 = vrot.slane %v551, %v588
    %v592 = vlaneseq
    %v593 = vshrl.u32 %v592, 7
    %v594 = vsub.s32 0, %v593
    %v595 = vrot.slane %v554, %v594
    %v597 = vsel %vm155, %v533, %v559
    %v598 = vsel %vm157, %v597, %v565
    %v599 = vsel %vm159, %v598, %v571
    %v600 = vsel %vm161, %v599, %v577
    %v601 = vsel %vm163, %v600, %v583
    %v602 = vsel %vm165, %v601, %v589
    %v603 = vsel %vm167, %v602, %v595
    %604 = vmatprep.subr.mxu0 0.0
    %605 = vmatpush1.msra.mxu0 %v73
    %606 = vmatprep.subr.mxu0 0.0
    %607 = vmatpush1.msra.mxu0 %v74
    %608 = vmatprep.subr.mxu0 0.0
    %609 = vmatpush1.msra.mxu0 %v75
    %610 = vmatprep.subr.mxu0 0.0
    %611 = vmatpush1.msra.mxu0 %v76
    %612 = vmatprep.subr.mxu0 0.0
    %613 = vmatpush1.msra.mxu0 %v77
    %614 = vmatprep.subr.mxu0 0.0
    %615 = vmatpush1.msra.mxu0 %v78
    %616 = vmatprep.subr.mxu0 0.0
    %617 = vmatpush1.msra.mxu0 %v79
    %618 = vmatprep.subr.mxu0 0.0
    %619 = vmatpush1.msra.mxu0 %v80
    %620 = vmatprep.subr.mxu0 0.0
    %621 = vmatpush1.msra.mxu0 %v81
    %622 = vmatprep.subr.mxu0 0.0
    %623 = vmatpush1.msra.mxu0 %v82
    %624 = vmatprep.subr.mxu0 0.0
    %625 = vmatpush1.msra.mxu0 %v83
    %626 = vmatprep.subr.mxu0 0.0
    %627 = vmatpush1.msra.mxu0 %v84
    %628 = vmatprep.subr.mxu0 0.0
    %629 = vmatpush1.msra.mxu0 %v85
    %630 = vmatprep.subr.mxu0 0.0
    %631 = vmatpush1.msra.mxu0 %v86
    %632 = vmatprep.subr.mxu0 0.0
    %633 = vmatpush1.msra.mxu0 %v87
    %634 = vmatprep.subr.mxu0 0.0
    %635 = vmatpush1.msra.mxu0 %v88
    %636 = vmatprep.subr.mxu0 0.0
    %637 = vmatpush1.msra.mxu0 0.0
    %638 = vmatprep.subr.mxu0 0.0
    %639 = vmatpush1.msra.mxu0 0.0
    %640 = vmatprep.subr.mxu0 0.0
    %641 = vmatpush1.msra.mxu0 0.0
    %642 = vmatprep.subr.mxu0 0.0
    %643 = vmatpush1.msra.mxu0 0.0
    %644 = vmatprep.subr.mxu0 0.0
    %645 = vmatpush1.msra.mxu0 0.0
    %646 = vmatprep.subr.mxu0 0.0
    %647 = vmatpush1.msra.mxu0 0.0
    %648 = vmatprep.subr.mxu0 0.0
    %649 = vmatpush1.msra.mxu0 0.0
    %650 = vmatprep.subr.mxu0 0.0
    %651 = vmatpush1.msra.mxu0 0.0
    %652 = vmatprep.subr.mxu0 0.0
    %653 = vmatpush1.msra.mxu0 0.0
    %654 = vmatprep.subr.mxu0 0.0
    %655 = vmatpush1.msra.mxu0 0.0
    %656 = vmatprep.subr.mxu0 0.0
    %657 = vmatpush1.msra.mxu0 0.0
    %658 = vmatprep.subr.mxu0 0.0
    %659 = vmatpush1.msra.mxu0 0.0
    %660 = vmatprep.subr.mxu0 0.0
    %661 = vmatpush1.msra.mxu0 0.0
    %662 = vmatprep.subr.mxu0 0.0
    %663 = vmatpush1.msra.mxu0 0.0
    %664 = vmatprep.subr.mxu0 0.0
    %665 = vmatpush1.msra.mxu0 0.0
    %666 = vmatprep.subr.mxu0 0.0
    %667 = vmatpush1.msra.mxu0 0.0
    %668 = vmatprep.mubr.f32.mxu0 0.0
    %669 = vmatmul.mubr.f32.gmra.mrb[0].mxu0 %v530
    %v670 = vpop.f32.mrb[0].mxu0
    %v671 = vadd.f32 0.0, %v670
    %v672 = vpop.f32.mrb[0].mxu0
    %673 = vdwg.mxu0
    %v674 = vadd.f32 %v603, %v671
    %v675 = vtanh.pop %v674
    %s676 = sld [smem:[#allocation2 + $0x200]]
    %s677 = scalar_lea.vmem [#allocation6], %s676
    %v678 = vld [vmem:[%s677] sm:$0x1]
    %s679 = sld [smem:[#allocation2 + $0x201]]
    %s680 = scalar_lea.vmem [#allocation6], %s679
    %v681 = vld [vmem:[%s680] sm:$0x1]
    %s682 = sld [smem:[#allocation2 + $0x202]]
    %s683 = scalar_lea.vmem [#allocation6], %s682
    %v684 = vld [vmem:[%s683] sm:$0x1]
    %s685 = sld [smem:[#allocation2 + $0x203]]
    %s686 = scalar_lea.vmem [#allocation6], %s685
    %v687 = vld [vmem:[%s686] sm:$0x1]
    %s688 = sld [smem:[#allocation2 + $0x204]]
    %s689 = scalar_lea.vmem [#allocation6], %s688
    %v690 = vld [vmem:[%s689] sm:$0x1]
    %s691 = sld [smem:[#allocation2 + $0x205]]
    %s692 = scalar_lea.vmem [#allocation6], %s691
    %v693 = vld [vmem:[%s692] sm:$0x1]
    %s694 = sld [smem:[#allocation2 + $0x206]]
    %s695 = scalar_lea.vmem [#allocation6], %s694
    %v696 = vld [vmem:[%s695] sm:$0x1]
    %s697 = sld [smem:[#allocation2 + $0x207]]
    %s698 = scalar_lea.vmem [#allocation6], %s697
    %v699 = vld [vmem:[%s698] sm:$0x1]
    %v701 = vlaneseq
    %v702 = vshrl.u32 %v701, 7
    %v703 = vsub.s32 0, %v702
    %v704 = vrot.slane %v681, %v703
    %v707 = vlaneseq
    %v708 = vshrl.u32 %v707, 7
    %v709 = vsub.s32 0, %v708
    %v710 = vrot.slane %v684, %v709
    %v713 = vlaneseq
    %v714 = vshrl.u32 %v713, 7
    %v715 = vsub.s32 0, %v714
    %v716 = vrot.slane %v687, %v715
    %v719 = vlaneseq
    %v720 = vshrl.u32 %v719, 7
    %v721 = vsub.s32 0, %v720
    %v722 = vrot.slane %v690, %v721
    %v725 = vlaneseq
    %v726 = vshrl.u32 %v725, 7
    %v727 = vsub.s32 0, %v726
    %v728 = vrot.slane %v693, %v727
    %v731 = vlaneseq
    %v732 = vshrl.u32 %v731, 7
    %v733 = vsub.s32 0, %v732
    %v734 = vrot.slane %v696, %v733
    %v737 = vlaneseq
    %v738 = vshrl.u32 %v737, 7
    %v739 = vsub.s32 0, %v738
    %v740 = vrot.slane %v699, %v739
    %v742 = vsel %vm155, %v678, %v704
    %v743 = vsel %vm157, %v742, %v710
    %v744 = vsel %vm159, %v743, %v716
    %v745 = vsel %vm161, %v744, %v722
    %v746 = vsel %vm163, %v745, %v728
    %v747 = vsel %vm165, %v746, %v734
    %v748 = vsel %vm167, %v747, %v740
    %749 = vmatprep.subr.mxu0 0.0
    %750 = vmatpush1.msra.mxu0 %v73
    %751 = vmatprep.subr.mxu0 0.0
    %752 = vmatpush1.msra.mxu0 %v74
    %753 = vmatprep.subr.mxu0 0.0
    %754 = vmatpush1.msra.mxu0 %v75
    %755 = vmatprep.subr.mxu0 0.0
    %756 = vmatpush1.msra.mxu0 %v76
    %757 = vmatprep.subr.mxu0 0.0
    %758 = vmatpush1.msra.mxu0 %v77
    %759 = vmatprep.subr.mxu0 0.0
    %760 = vmatpush1.msra.mxu0 %v78
    %761 = vmatprep.subr.mxu0 0.0
    %762 = vmatpush1.msra.mxu0 %v79
    %763 = vmatprep.subr.mxu0 0.0
    %764 = vmatpush1.msra.mxu0 %v80
    %765 = vmatprep.subr.mxu0 0.0
    %766 = vmatpush1.msra.mxu0 %v81
    %767 = vmatprep.subr.mxu0 0.0
    %768 = vmatpush1.msra.mxu0 %v82
    %769 = vmatprep.subr.mxu0 0.0
    %770 = vmatpush1.msra.mxu0 %v83
    %771 = vmatprep.subr.mxu0 0.0
    %772 = vmatpush1.msra.mxu0 %v84
    %773 = vmatprep.subr.mxu0 0.0
    %774 = vmatpush1.msra.mxu0 %v85
    %775 = vmatprep.subr.mxu0 0.0
    %776 = vmatpush1.msra.mxu0 %v86
    %777 = vmatprep.subr.mxu0 0.0
    %778 = vmatpush1.msra.mxu0 %v87
    %779 = vmatprep.subr.mxu0 0.0
    %780 = vmatpush1.msra.mxu0 %v88
    %781 = vmatprep.subr.mxu0 0.0
    %782 = vmatpush1.msra.mxu0 0.0
    %783 = vmatprep.subr.mxu0 0.0
    %784 = vmatpush1.msra.mxu0 0.0
    %785 = vmatprep.subr.mxu0 0.0
    %786 = vmatpush1.msra.mxu0 0.0
    %787 = vmatprep.subr.mxu0 0.0
    %788 = vmatpush1.msra.mxu0 0.0
    %789 = vmatprep.subr.mxu0 0.0
    %790 = vmatpush1.msra.mxu0 0.0
    %791 = vmatprep.subr.mxu0 0.0
    %792 = vmatpush1.msra.mxu0 0.0
    %793 = vmatprep.subr.mxu0 0.0
    %794 = vmatpush1.msra.mxu0 0.0
    %795 = vmatprep.subr.mxu0 0.0
    %796 = vmatpush1.msra.mxu0 0.0
    %797 = vmatprep.subr.mxu0 0.0
    %798 = vmatpush1.msra.mxu0 0.0
    %799 = vmatprep.subr.mxu0 0.0
    %800 = vmatpush1.msra.mxu0 0.0
    %801 = vmatprep.subr.mxu0 0.0
    %802 = vmatpush1.msra.mxu0 0.0
    %803 = vmatprep.subr.mxu0 0.0
    %804 = vmatpush1.msra.mxu0 0.0
    %805 = vmatprep.subr.mxu0 0.0
    %806 = vmatpush1.msra.mxu0 0.0
    %807 = vmatprep.subr.mxu0 0.0
    %808 = vmatpush1.msra.mxu0 0.0
    %809 = vmatprep.subr.mxu0 0.0
    %810 = vmatpush1.msra.mxu0 0.0
    %811 = vmatprep.subr.mxu0 0.0
    %812 = vmatpush1.msra.mxu0 0.0
    %813 = vmatprep.mubr.f32.mxu0 0.0
    %814 = vmatmul.mubr.f32.gmra.mrb[0].mxu0 %v675
    %v815 = vpop.f32.mrb[0].mxu0
    %v816 = vadd.f32 0.0, %v815
    %v817 = vpop.f32.mrb[0].mxu0
    %818 = vdwg.mxu0
    %v819 = vadd.f32 %v748, %v816
    %v820 = vtanh.pop %v819
    %s821 = sld [smem:[#allocation2 + $0x280]]
    %s822 = scalar_lea.vmem [#allocation6], %s821
    %v823 = vld [vmem:[%s822] sm:$0x1]
    %s824 = sld [smem:[#allocation2 + $0x281]]
    %s825 = scalar_lea.vmem [#allocation6], %s824
    %v826 = vld [vmem:[%s825] sm:$0x1]
    %s827 = sld [smem:[#allocation2 + $0x282]]
    %s828 = scalar_lea.vmem [#allocation6], %s827
    %v829 = vld [vmem:[%s828] sm:$0x1]
    %s830 = sld [smem:[#allocation2 + $0x283]]
    %s831 = scalar_lea.vmem [#allocation6], %s830
    %v832 = vld [vmem:[%s831] sm:$0x1]
    %s833 = sld [smem:[#allocation2 + $0x284]]
    %s834 = scalar_lea.vmem [#allocation6], %s833
    %v835 = vld [vmem:[%s834] sm:$0x1]
    %s836 = sld [smem:[#allocation2 + $0x285]]
    %s837 = scalar_lea.vmem [#allocation6], %s836
    %v838 = vld [vmem:[%s837] sm:$0x1]
    %s839 = sld [smem:[#allocation2 + $0x286]]
    %s840 = scalar_lea.vmem [#allocation6], %s839
    %v841 = vld [vmem:[%s840] sm:$0x1]
    %s842 = sld [smem:[#allocation2 + $0x287]]
    %s843 = scalar_lea.vmem [#allocation6], %s842
    %v844 = vld [vmem:[%s843] sm:$0x1]
    %v846 = vlaneseq
    %v847 = vshrl.u32 %v846, 7
    %v848 = vsub.s32 0, %v847
    %v849 = vrot.slane %v826, %v848
    %v852 = vlaneseq
    %v853 = vshrl.u32 %v852, 7
    %v854 = vsub.s32 0, %v853
    %v855 = vrot.slane %v829, %v854
    %v858 = vlaneseq
    %v859 = vshrl.u32 %v858, 7
    %v860 = vsub.s32 0, %v859
    %v861 = vrot.slane %v832, %v860
    %v864 = vlaneseq
    %v865 = vshrl.u32 %v864, 7
    %v866 = vsub.s32 0, %v865
    %v867 = vrot.slane %v835, %v866
    %v870 = vlaneseq
    %v871 = vshrl.u32 %v870, 7
    %v872 = vsub.s32 0, %v871
    %v873 = vrot.slane %v838, %v872
    %v876 = vlaneseq
    %v877 = vshrl.u32 %v876, 7
    %v878 = vsub.s32 0, %v877
    %v879 = vrot.slane %v841, %v878
    %v882 = vlaneseq
    %v883 = vshrl.u32 %v882, 7
    %v884 = vsub.s32 0, %v883
    %v885 = vrot.slane %v844, %v884
    %v887 = vsel %vm155, %v823, %v849
    %v888 = vsel %vm157, %v887, %v855
    %v889 = vsel %vm159, %v888, %v861
    %v890 = vsel %vm161, %v889, %v867
    %v891 = vsel %vm163, %v890, %v873
    %v892 = vsel %vm165, %v891, %v879
    %v893 = vsel %vm167, %v892, %v885
    %894 = vmatprep.subr.mxu0 0.0
    %895 = vmatpush1.msra.mxu0 %v73
    %896 = vmatprep.subr.mxu0 0.0
    %897 = vmatpush1.msra.mxu0 %v74
    %898 = vmatprep.subr.mxu0 0.0
    %899 = vmatpush1.msra.mxu0 %v75
    %900 = vmatprep.subr.mxu0 0.0
    %901 = vmatpush1.msra.mxu0 %v76
    %902 = vmatprep.subr.mxu0 0.0
    %903 = vmatpush1.msra.mxu0 %v77
    %904 = vmatprep.subr.mxu0 0.0
    %905 = vmatpush1.msra.mxu0 %v78
    %906 = vmatprep.subr.mxu0 0.0
    %907 = vmatpush1.msra.mxu0 %v79
    %908 = vmatprep.subr.mxu0 0.0
    %909 = vmatpush1.msra.mxu0 %v80
    %910 = vmatprep.subr.mxu0 0.0
    %911 = vmatpush1.msra.mxu0 %v81
    %912 = vmatprep.subr.mxu0 0.0
    %913 = vmatpush1.msra.mxu0 %v82
    %914 = vmatprep.subr.mxu0 0.0
    %915 = vmatpush1.msra.mxu0 %v83
    %916 = vmatprep.subr.mxu0 0.0
    %917 = vmatpush1.msra.mxu0 %v84
    %918 = vmatprep.subr.mxu0 0.0
    %919 = vmatpush1.msra.mxu0 %v85
    %920 = vmatprep.subr.mxu0 0.0
    %921 = vmatpush1.msra.mxu0 %v86
    %922 = vmatprep.subr.mxu0 0.0
    %923 = vmatpush1.msra.mxu0 %v87
    %924 = vmatprep.subr.mxu0 0.0
    %925 = vmatpush1.msra.mxu0 %v88
    %926 = vmatprep.subr.mxu0 0.0
    %927 = vmatpush1.msra.mxu0 0.0
    %928 = vmatprep.subr.mxu0 0.0
    %929 = vmatpush1.msra.mxu0 0.0
    %930 = vmatprep.subr.mxu0 0.0
    %931 = vmatpush1.msra.mxu0 0.0
    %932 = vmatprep.subr.mxu0 0.0
    %933 = vmatpush1.msra.mxu0 0.0
    %934 = vmatprep.subr.mxu0 0.0
    %935 = vmatpush1.msra.mxu0 0.0
    %936 = vmatprep.subr.mxu0 0.0
    %937 = vmatpush1.msra.mxu0 0.0
    %938 = vmatprep.subr.mxu0 0.0
    %939 = vmatpush1.msra.mxu0 0.0
    %940 = vmatprep.subr.mxu0 0.0
    %941 = vmatpush1.msra.mxu0 0.0
    %942 = vmatprep.subr.mxu0 0.0
    %943 = vmatpush1.msra.mxu0 0.0
    %944 = vmatprep.subr.mxu0 0.0
    %945 = vmatpush1.msra.mxu0 0.0
    %946 = vmatprep.subr.mxu0 0.0
    %947 = vmatpush1.msra.mxu0 0.0
    %948 = vmatprep.subr.mxu0 0.0
    %949 = vmatpush1.msra.mxu0 0.0
    %950 = vmatprep.subr.mxu0 0.0
    %951 = vmatpush1.msra.mxu0 0.0
    %952 = vmatprep.subr.mxu0 0.0
    %953 = vmatpush1.msra.mxu0 0.0
    %954 = vmatprep.subr.mxu0 0.0
    %955 = vmatpush1.msra.mxu0 0.0
    %956 = vmatprep.subr.mxu0 0.0
    %957 = vmatpush1.msra.mxu0 0.0
    %958 = vmatprep.mubr.f32.mxu0 0.0
    %959 = vmatmul.mubr.f32.gmra.mrb[0].mxu0 %v820
    %v960 = vpop.f32.mrb[0].mxu0
    %v961 = vadd.f32 0.0, %v960
    %v962 = vpop.f32.mrb[0].mxu0
    %963 = vdwg.mxu0
    %v964 = vadd.f32 %v893, %v961
    %v965 = vtanh.pop %v964
    %s966 = sld [smem:[#allocation2 + $0x300]]
    %s967 = scalar_lea.vmem [#allocation6], %s966
    %v968 = vld [vmem:[%s967] sm:$0x1]
    %s969 = sld [smem:[#allocation2 + $0x301]]
    %s970 = scalar_lea.vmem [#allocation6], %s969
    %v971 = vld [vmem:[%s970] sm:$0x1]
    %s972 = sld [smem:[#allocation2 + $0x302]]
    %s973 = scalar_lea.vmem [#allocation6], %s972
    %v974 = vld [vmem:[%s973] sm:$0x1]
    %s975 = sld [smem:[#allocation2 + $0x303]]
    %s976 = scalar_lea.vmem [#allocation6], %s975
    %v977 = vld [vmem:[%s976] sm:$0x1]
    %s978 = sld [smem:[#allocation2 + $0x304]]
    %s979 = scalar_lea.vmem [#allocation6], %s978
    %v980 = vld [vmem:[%s979] sm:$0x1]
    %s981 = sld [smem:[#allocation2 + $0x305]]
    %s982 = scalar_lea.vmem [#allocation6], %s981
    %v983 = vld [vmem:[%s982] sm:$0x1]
    %s984 = sld [smem:[#allocation2 + $0x306]]
    %s985 = scalar_lea.vmem [#allocation6], %s984
    %v986 = vld [vmem:[%s985] sm:$0x1]
    %s987 = sld [smem:[#allocation2 + $0x307]]
    %s988 = scalar_lea.vmem [#allocation6], %s987
    %v989 = vld [vmem:[%s988] sm:$0x1]
    %v991 = vlaneseq
    %v992 = vshrl.u32 %v991, 7
    %v993 = vsub.s32 0, %v992
    %v994 = vrot.slane %v971, %v993
    %v997 = vlaneseq
    %v998 = vshrl.u32 %v997, 7
    %v999 = vsub.s32 0, %v998
    %v1000 = vrot.slane %v974, %v999
    %v1003 = vlaneseq
    %v1004 = vshrl.u32 %v1003, 7
    %v1005 = vsub.s32 0, %v1004
    %v1006 = vrot.slane %v977, %v1005
    %v1009 = vlaneseq
    %v1010 = vshrl.u32 %v1009, 7
    %v1011 = vsub.s32 0, %v1010
    %v1012 = vrot.slane %v980, %v1011
    %v1015 = vlaneseq
    %v1016 = vshrl.u32 %v1015, 7
    %v1017 = vsub.s32 0, %v1016
    %v1018 = vrot.slane %v983, %v1017
    %v1021 = vlaneseq
    %v1022 = vshrl.u32 %v1021, 7
    %v1023 = vsub.s32 0, %v1022
    %v1024 = vrot.slane %v986, %v1023
    %v1027 = vlaneseq
    %v1028 = vshrl.u32 %v1027, 7
    %v1029 = vsub.s32 0, %v1028
    %v1030 = vrot.slane %v989, %v1029
    %v1032 = vsel %vm155, %v968, %v994
    %v1033 = vsel %vm157, %v1032, %v1000
    %v1034 = vsel %vm159, %v1033, %v1006
    %v1035 = vsel %vm161, %v1034, %v1012
    %v1036 = vsel %vm163, %v1035, %v1018
    %v1037 = vsel %vm165, %v1036, %v1024
    %v1038 = vsel %vm167, %v1037, %v1030
    %1039 = vmatprep.subr.mxu0 0.0
    %1040 = vmatpush1.msra.mxu0 %v73
    %1041 = vmatprep.subr.mxu0 0.0
    %1042 = vmatpush1.msra.mxu0 %v74
    %1043 = vmatprep.subr.mxu0 0.0
    %1044 = vmatpush1.msra.mxu0 %v75
    %1045 = vmatprep.subr.mxu0 0.0
    %1046 = vmatpush1.msra.mxu0 %v76
    %1047 = vmatprep.subr.mxu0 0.0
    %1048 = vmatpush1.msra.mxu0 %v77
    %1049 = vmatprep.subr.mxu0 0.0
    %1050 = vmatpush1.msra.mxu0 %v78
    %1051 = vmatprep.subr.mxu0 0.0
    %1052 = vmatpush1.msra.mxu0 %v79
    %1053 = vmatprep.subr.mxu0 0.0
    %1054 = vmatpush1.msra.mxu0 %v80
    %1055 = vmatprep.subr.mxu0 0.0
    %1056 = vmatpush1.msra.mxu0 %v81
    %1057 = vmatprep.subr.mxu0 0.0
    %1058 = vmatpush1.msra.mxu0 %v82
    %1059 = vmatprep.subr.mxu0 0.0
    %1060 = vmatpush1.msra.mxu0 %v83
    %1061 = vmatprep.subr.mxu0 0.0
    %1062 = vmatpush1.msra.mxu0 %v84
    %1063 = vmatprep.subr.mxu0 0.0
    %1064 = vmatpush1.msra.mxu0 %v85
    %1065 = vmatprep.subr.mxu0 0.0
    %1066 = vmatpush1.msra.mxu0 %v86
    %1067 = vmatprep.subr.mxu0 0.0
    %1068 = vmatpush1.msra.mxu0 %v87
    %1069 = vmatprep.subr.mxu0 0.0
    %1070 = vmatpush1.msra.mxu0 %v88
    %1071 = vmatprep.subr.mxu0 0.0
    %1072 = vmatpush1.msra.mxu0 0.0
    %1073 = vmatprep.subr.mxu0 0.0
    %1074 = vmatpush1.msra.mxu0 0.0
    %1075 = vmatprep.subr.mxu0 0.0
    %1076 = vmatpush1.msra.mxu0 0.0
    %1077 = vmatprep.subr.mxu0 0.0
    %1078 = vmatpush1.msra.mxu0 0.0
    %1079 = vmatprep.subr.mxu0 0.0
    %1080 = vmatpush1.msra.mxu0 0.0
    %1081 = vmatprep.subr.mxu0 0.0
    %1082 = vmatpush1.msra.mxu0 0.0
    %1083 = vmatprep.subr.mxu0 0.0
    %1084 = vmatpush1.msra.mxu0 0.0
    %1085 = vmatprep.subr.mxu0 0.0
    %1086 = vmatpush1.msra.mxu0 0.0
    %1087 = vmatprep.subr.mxu0 0.0
    %1088 = vmatpush1.msra.mxu0 0.0
    %1089 = vmatprep.subr.mxu0 0.0
    %1090 = vmatpush1.msra.mxu0 0.0
    %1091 = vmatprep.subr.mxu0 0.0
    %1092 = vmatpush1.msra.mxu0 0.0
    %1093 = vmatprep.subr.mxu0 0.0
    %1094 = vmatpush1.msra.mxu0 0.0
    %1095 = vmatprep.subr.mxu0 0.0
    %1096 = vmatpush1.msra.mxu0 0.0
    %1097 = vmatprep.subr.mxu0 0.0
    %1098 = vmatpush1.msra.mxu0 0.0
    %1099 = vmatprep.subr.mxu0 0.0
    %1100 = vmatpush1.msra.mxu0 0.0
    %1101 = vmatprep.subr.mxu0 0.0
    %1102 = vmatpush1.msra.mxu0 0.0
    %1103 = vmatprep.mubr.f32.mxu0 0.0
    %1104 = vmatmul.mubr.f32.gmra.mrb[0].mxu0 %v965
    %v1105 = vpop.f32.mrb[0].mxu0
    %v1106 = vadd.f32 0.0, %v1105
    %v1107 = vpop.f32.mrb[0].mxu0
    %1108 = vdwg.mxu0
    %v1109 = vadd.f32 %v1038, %v1106
    %v1110 = vtanh.pop %v1109
    %s1111 = sld [smem:[#allocation2 + $0x380]]
    %s1112 = scalar_lea.vmem [#allocation6], %s1111
    %v1113 = vld [vmem:[%s1112] sm:$0x1]
    %s1114 = sld [smem:[#allocation2 + $0x381]]
    %s1115 = scalar_lea.vmem [#allocation6], %s1114
    %v1116 = vld [vmem:[%s1115] sm:$0x1]
    %s1117 = sld [smem:[#allocation2 + $0x382]]
    %s1118 = scalar_lea.vmem [#allocation6], %s1117
    %v1119 = vld [vmem:[%s1118] sm:$0x1]
    %s1120 = sld [smem:[#allocation2 + $0x383]]
    %s1121 = scalar_lea.vmem [#allocation6], %s1120
    %v1122 = vld [vmem:[%s1121] sm:$0x1]
    %s1123 = sld [smem:[#allocation2 + $0x384]]
    %s1124 = scalar_lea.vmem [#allocation6], %s1123
    %v1125 = vld [vmem:[%s1124] sm:$0x1]
    %s1126 = sld [smem:[#allocation2 + $0x385]]
    %s1127 = scalar_lea.vmem [#allocation6], %s1126
    %v1128 = vld [vmem:[%s1127] sm:$0x1]
    %s1129 = sld [smem:[#allocation2 + $0x386]]
    %s1130 = scalar_lea.vmem [#allocation6], %s1129
    %v1131 = vld [vmem:[%s1130] sm:$0x1]
    %s1132 = sld [smem:[#allocation2 + $0x387]]
    %s1133 = scalar_lea.vmem [#allocation6], %s1132
    %v1134 = vld [vmem:[%s1133] sm:$0x1]
    %v1136 = vlaneseq
    %v1137 = vshrl.u32 %v1136, 7
    %v1138 = vsub.s32 0, %v1137
    %v1139 = vrot.slane %v1116, %v1138
    %v1142 = vlaneseq
    %v1143 = vshrl.u32 %v1142, 7
    %v1144 = vsub.s32 0, %v1143
    %v1145 = vrot.slane %v1119, %v1144
    %v1148 = vlaneseq
    %v1149 = vshrl.u32 %v1148, 7
    %v1150 = vsub.s32 0, %v1149
    %v1151 = vrot.slane %v1122, %v1150
    %v1154 = vlaneseq
    %v1155 = vshrl.u32 %v1154, 7
    %v1156 = vsub.s32 0, %v1155
    %v1157 = vrot.slane %v1125, %v1156
    %v1160 = vlaneseq
    %v1161 = vshrl.u32 %v1160, 7
    %v1162 = vsub.s32 0, %v1161
    %v1163 = vrot.slane %v1128, %v1162
    %v1166 = vlaneseq
    %v1167 = vshrl.u32 %v1166, 7
    %v1168 = vsub.s32 0, %v1167
    %v1169 = vrot.slane %v1131, %v1168
    %v1172 = vlaneseq
    %v1173 = vshrl.u32 %v1172, 7
    %v1174 = vsub.s32 0, %v1173
    %v1175 = vrot.slane %v1134, %v1174
    %v1177 = vsel %vm155, %v1113, %v1139
    %v1178 = vsel %vm157, %v1177, %v1145
    %v1179 = vsel %vm159, %v1178, %v1151
    %v1180 = vsel %vm161, %v1179, %v1157
    %v1181 = vsel %vm163, %v1180, %v1163
    %v1182 = vsel %vm165, %v1181, %v1169
    %v1183 = vsel %vm167, %v1182, %v1175
    %1184 = vmatprep.subr.mxu0 0.0
    %1185 = vmatpush1.msra.mxu0 %v73
    %1186 = vmatprep.subr.mxu0 0.0
    %1187 = vmatpush1.msra.mxu0 %v74
    %1188 = vmatprep.subr.mxu0 0.0
    %1189 = vmatpush1.msra.mxu0 %v75
    %1190 = vmatprep.subr.mxu0 0.0
    %1191 = vmatpush1.msra.mxu0 %v76
    %1192 = vmatprep.subr.mxu0 0.0
    %1193 = vmatpush1.msra.mxu0 %v77
    %1194 = vmatprep.subr.mxu0 0.0
    %1195 = vmatpush1.msra.mxu0 %v78
    %1196 = vmatprep.subr.mxu0 0.0
    %1197 = vmatpush1.msra.mxu0 %v79
    %1198 = vmatprep.subr.mxu0 0.0
    %1199 = vmatpush1.msra.mxu0 %v80
    %1200 = vmatprep.subr.mxu0 0.0
    %1201 = vmatpush1.msra.mxu0 %v81
    %1202 = vmatprep.subr.mxu0 0.0
    %1203 = vmatpush1.msra.mxu0 %v82
    %1204 = vmatprep.subr.mxu0 0.0
    %1205 = vmatpush1.msra.mxu0 %v83
    %1206 = vmatprep.subr.mxu0 0.0
    %1207 = vmatpush1.msra.mxu0 %v84
    %1208 = vmatprep.subr.mxu0 0.0
    %1209 = vmatpush1.msra.mxu0 %v85
    %1210 = vmatprep.subr.mxu0 0.0
    %1211 = vmatpush1.msra.mxu0 %v86
    %1212 = vmatprep.subr.mxu0 0.0
    %1213 = vmatpush1.msra.mxu0 %v87
    %1214 = vmatprep.subr.mxu0 0.0
    %1215 = vmatpush1.msra.mxu0 %v88
    %1216 = vmatprep.subr.mxu0 0.0
    %1217 = vmatpush1.msra.mxu0 0.0
    %1218 = vmatprep.subr.mxu0 0.0
    %1219 = vmatpush1.msra.mxu0 0.0
    %1220 = vmatprep.subr.mxu0 0.0
    %1221 = vmatpush1.msra.mxu0 0.0
    %1222 = vmatprep.subr.mxu0 0.0
    %1223 = vmatpush1.msra.mxu0 0.0
    %1224 = vmatprep.subr.mxu0 0.0
    %1225 = vmatpush1.msra.mxu0 0.0
    %1226 = vmatprep.subr.mxu0 0.0
    %1227 = vmatpush1.msra.mxu0 0.0
    %1228 = vmatprep.subr.mxu0 0.0
    %1229 = vmatpush1.msra.mxu0 0.0
    %1230 = vmatprep.subr.mxu0 0.0
    %1231 = vmatpush1.msra.mxu0 0.0
    %1232 = vmatprep.subr.mxu0 0.0
    %1233 = vmatpush1.msra.mxu0 0.0
    %1234 = vmatprep.subr.mxu0 0.0
    %1235 = vmatpush1.msra.mxu0 0.0
    %1236 = vmatprep.subr.mxu0 0.0
    %1237 = vmatpush1.msra.mxu0 0.0
    %1238 = vmatprep.subr.mxu0 0.0
    %1239 = vmatpush1.msra.mxu0 0.0
    %1240 = vmatprep.subr.mxu0 0.0
    %1241 = vmatpush1.msra.mxu0 0.0
    %1242 = vmatprep.subr.mxu0 0.0
    %1243 = vmatpush1.msra.mxu0 0.0
    %1244 = vmatprep.subr.mxu0 0.0
    %1245 = vmatpush1.msra.mxu0 0.0
    %1246 = vmatprep.subr.mxu0 0.0
    %1247 = vmatpush1.msra.mxu0 0.0
    %1248 = vmatprep.mubr.f32.mxu0 0.0
    %1249 = vmatmul.mubr.f32.gmra.mrb[0].mxu0 %v1110
    %v1250 = vpop.f32.mrb[0].mxu0
    %v1251 = vadd.f32 0.0, %v1250
    %v1252 = vpop.f32.mrb[0].mxu0
    %1253 = vdwg.mxu0
    %v1254 = vadd.f32 %v1183, %v1251
    %v1255 = vtanh.pop %v1254
    %v1256 = vld [vmem:[#allocation9] sm:$0xff]
    %v1257 = vld [vmem:[#allocation9 + $0x8] sm:$0xff]
    %v1258 = vld [vmem:[#allocation9 + $0x10] sm:$0xff]
    %v1259 = vld [vmem:[#allocation9 + $0x18] sm:$0xff]
    %v1260 = vld [vmem:[#allocation9 + $0x20] sm:$0xff]
    %v1261 = vld [vmem:[#allocation9 + $0x28] sm:$0xff]
    %v1262 = vld [vmem:[#allocation9 + $0x30] sm:$0xff]
    %v1263 = vld [vmem:[#allocation9 + $0x38] sm:$0xff]
    %v1264 = vld [vmem:[#allocation9 + $0x40] sm:$0xff]
    %v1265 = vld [vmem:[#allocation9 + $0x48] sm:$0xff]
    %v1266 = vld [vmem:[#allocation9 + $0x50] sm:$0xff]
    %v1267 = vld [vmem:[#allocation9 + $0x58] sm:$0xff]
    %v1268 = vld [vmem:[#allocation9 + $0x60] sm:$0xff]
    %v1269 = vld [vmem:[#allocation9 + $0x68] sm:$0xff]
    %v1270 = vld [vmem:[#allocation9 + $0x70] sm:$0xff]
    %v1271 = vld [vmem:[#allocation9 + $0x78] sm:$0xff]
    %v1272 = vld [vmem:[%s4] sm:$0x1]
    %v1274 = vlaneseq
    %v1275 = vshrl.u32 %v1274, 7
    %v1276 = vsub.s32 0, %v1275
    %v1277 = vrot.slane %v1272, %v1276
    %1279 = vmatprep.subr.mxu0 0.0
    %1280 = vmatpush1.msra.mxu0 %v1256
    %1281 = vmatprep.subr.mxu0 0.0
    %1282 = vmatpush1.msra.mxu0 %v1257
    %1283 = vmatprep.subr.mxu0 0.0
    %1284 = vmatpush1.msra.mxu0 %v1258
    %1285 = vmatprep.subr.mxu0 0.0
    %1286 = vmatpush1.msra.mxu0 %v1259
    %1287 = vmatprep.subr.mxu0 0.0
    %1288 = vmatpush1.msra.mxu0 %v1260
    %1289 = vmatprep.subr.mxu0 0.0
    %1290 = vmatpush1.msra.mxu0 %v1261
    %1291 = vmatprep.subr.mxu0 0.0
    %1292 = vmatpush1.msra.mxu0 %v1262
    %1293 = vmatprep.subr.mxu0 0.0
    %1294 = vmatpush1.msra.mxu0 %v1263
    %1295 = vmatprep.subr.mxu0 0.0
    %1296 = vmatpush1.msra.mxu0 %v1264
    %1297 = vmatprep.subr.mxu0 0.0
    %1298 = vmatpush1.msra.mxu0 %v1265
    %1299 = vmatprep.subr.mxu0 0.0
    %1300 = vmatpush1.msra.mxu0 %v1266
    %1301 = vmatprep.subr.mxu0 0.0
    %1302 = vmatpush1.msra.mxu0 %v1267
    %1303 = vmatprep.subr.mxu0 0.0
    %1304 = vmatpush1.msra.mxu0 %v1268
    %1305 = vmatprep.subr.mxu0 0.0
    %1306 = vmatpush1.msra.mxu0 %v1269
    %1307 = vmatprep.subr.mxu0 0.0
    %1308 = vmatpush1.msra.mxu0 %v1270
    %1309 = vmatprep.subr.mxu0 0.0
    %1310 = vmatpush1.msra.mxu0 %v1271
    %1311 = vmatprep.subr.mxu0 0.0
    %1312 = vmatpush1.msra.mxu0 0.0
    %1313 = vmatprep.subr.mxu0 0.0
    %1314 = vmatpush1.msra.mxu0 0.0
    %1315 = vmatprep.subr.mxu0 0.0
    %1316 = vmatpush1.msra.mxu0 0.0
    %1317 = vmatprep.subr.mxu0 0.0
    %1318 = vmatpush1.msra.mxu0 0.0
    %1319 = vmatprep.subr.mxu0 0.0
    %1320 = vmatpush1.msra.mxu0 0.0
    %1321 = vmatprep.subr.mxu0 0.0
    %1322 = vmatpush1.msra.mxu0 0.0
    %1323 = vmatprep.subr.mxu0 0.0
    %1324 = vmatpush1.msra.mxu0 0.0
    %1325 = vmatprep.subr.mxu0 0.0
    %1326 = vmatpush1.msra.mxu0 0.0
    %1327 = vmatprep.subr.mxu0 0.0
    %1328 = vmatpush1.msra.mxu0 0.0
    %1329 = vmatprep.subr.mxu0 0.0
    %1330 = vmatpush1.msra.mxu0 0.0
    %1331 = vmatprep.subr.mxu0 0.0
    %1332 = vmatpush1.msra.mxu0 0.0
    %1333 = vmatprep.subr.mxu0 0.0
    %1334 = vmatpush1.msra.mxu0 0.0
    %1335 = vmatprep.subr.mxu0 0.0
    %1336 = vmatpush1.msra.mxu0 0.0
    %1337 = vmatprep.subr.mxu0 0.0
    %1338 = vmatpush1.msra.mxu0 0.0
    %1339 = vmatprep.subr.mxu0 0.0
    %1340 = vmatpush1.msra.mxu0 0.0
    %1341 = vmatprep.subr.mxu0 0.0
    %1342 = vmatpush1.msra.mxu0 0.0
    %1343 = vmatprep.mubr.f32.mxu0 0.0
    %1344 = vmatmul.mubr.f32.gmra.mrb[0].mxu0 %v1255
    %v1345 = vpop.f32.mrb[0].mxu0
    %v1346 = vadd.f32 %v1277, %v1345
    %v1347 = vpop.f32.mrb[0].mxu0
    %1348 = vdwg.mxu0
    %1349 = vst [vmem:[#allocation10] sm:$0xff] %v1346
    // Predicated region
    $region38: #{tpu_custom_call.1} parent=1 // pred_check
      _
    $region39: #{tpu_custom_call.1} parent=1 // pred_check_branch
      %1351 = sbr.rel (0) target = $region41
    $region40: #{tpu_custom_call.1} parent=1 // pred_region
      %s1353 = ssub.s32 128, 128
      %1354 = vsyncadd [#allocation4], %s1353
      %s1356 = sshll.u32 [#allocation10], 4
      %s1357 = int_to_ptr.vmem [resolvable:$true] %s1356
      %1359 = dma.vmem_to_hbm [thread:$0]  %s1357, 128, %s5, [#allocation4]
    $region41: #{tpu_custom_call.1} parent=1 // pred_fallthru
      _
    // Predicated region
    $region42: #{tpu_custom_call.1} parent=1 // pred_check
      _
    $region43: #{tpu_custom_call.1} parent=1 // pred_check_branch
      %1361 = sbr.rel (0) target = $region45
    $region44: #{tpu_custom_call.1} parent=1 // pred_region
      %1362 = dma.done [#allocation4], 128
    $region45: #{tpu_custom_call.1} parent=1 // pred_fallthru
      _
    %1363 = vsyncpa [#allocation3], 1
    %1364 = vsyncpa [#allocation8], 1
    %1365 = vsyncpa [#allocation4], 1
    %1366 = vsyncpa [#allocation5], 1

</llo_original>
